<compile_context>
chip_gen: v7x
topology: tpu7x:2x2x1
jax: 0.10.0
libtpu: 0.0.40
codegen_flags: <defaults>
</compile_context>

<pallas_src>
import numpy as np
import jax
import jax.numpy as jnp
from jax.experimental import pallas as pl
from jax.experimental.pallas import tpu as pltpu


# ----------------------------------------------------------------------------
# helpers
# ----------------------------------------------------------------------------
def _round_up(x, m):
    return (x + m - 1) // m * m


def _choose_row_tiling(m):
    """Return (m_padded, tm): 8-sublane-aligned row tile, preferring >=2 row
    blocks (v7x has 2 TensorCores) with tiles capped at 512 rows."""
    mp = _round_up(m, 8)
    if mp <= 8:
        return mp, mp
    tm = min(512, _round_up((mp + 1) // 2, 8))
    mp = _round_up(mp, tm)
    return mp, tm


def _bilinear_matrix(n, hx, wx, hy, wy, m_rows):
    """Dense interpolation matrix U of shape (m_rows, n*hx*wx), f32, with
    zup.reshape(-1, C) == U @ z.reshape(-1, C) implementing
    F.upsample_bilinear(..., align_corners=True).  <=4 nonzeros per row.
    Built host-side with numpy from static shapes (a jit constant)."""
    def axis_w(out_n, in_n):
        w = np.zeros((out_n, in_n), np.float32)
        if out_n == 1:
            coords = np.zeros((1,), np.float64)
        else:
            coords = np.arange(out_n, dtype=np.float64) * ((in_n - 1) / (out_n - 1))
        i0 = np.clip(np.floor(coords).astype(np.int64), 0, in_n - 1)
        i1 = np.clip(i0 + 1, 0, in_n - 1)
        f = (coords - i0).astype(np.float32)
        for o in range(out_n):
            w[o, i0[o]] += 1.0 - f[o]
            w[o, i1[o]] += f[o]
        return w

    ub = np.kron(axis_w(hy, hx), axis_w(wy, wx))       # (hy*wy, hx*wx)
    u = np.kron(np.eye(n, dtype=np.float32), ub)       # block-diagonal over batch
    if m_rows > u.shape[0]:                            # free row padding
        u = np.pad(u, ((0, m_rows - u.shape[0]), (0, 0)))
    return jnp.asarray(u)


# ----------------------------------------------------------------------------
# fused Pallas kernel: conv1 -> upsample -> gate -> conv2 -> relu
# ----------------------------------------------------------------------------
def _attention_fused_kernel(x_ref, w1_ref, b1_ref, u_ref, y_ref, w2_ref,
                            b2_ref, o_ref):
    # conv1 (1x1) over the full (small) coarse map, kept resident in VMEM.
    # Recomputed per row tile instead of a pl.when(i==0) scratch so there is
    # no cross-step state and the row grid axis is safely "parallel".
    z = jnp.dot(x_ref[...], w1_ref[...],
                preferred_element_type=jnp.float32) + b1_ref[...]
    # Bilinear upsample (align_corners=True) of this tile's output rows as a
    # tiny f32 MXU matmul with the precomputed interpolation matrix.
    zup = jnp.dot(u_ref[...], z, preferred_element_type=jnp.float32)
    # Attention gate in f32 (VPU + EUP).
    yv = y_ref[...].astype(jnp.float32)
    g = jax.nn.sigmoid(jnp.maximum(zup + yv, 0.0)) * yv
    # conv2 (1x1): bf16 MXU operands, f32 accumulation, fused bias + ReLU.
    out = jnp.dot(g.astype(w2_ref.dtype), w2_ref[...],
                  preferred_element_type=jnp.float32)
    o_ref[...] = jnp.maximum(out + b2_ref[...], 0.0).astype(o_ref.dtype)


def attention_fused(x_flat, u, y_flat, w1, b1, w2, b2, *,
                    out_dtype=jnp.float32):
    """Fused module body on flattened NHWC activations.
    x_flat: (Mx, Cxp) bf16, u: (Mp, Mx) f32, y_flat: (Mp, Cyp) bf16,
    w1: (Cxp, Cyp) bf16, w2: (Cyp, Cyp) bf16, b1/b2: (Cyp,) f32."""
    mx, cxp = x_flat.shape
    mp, mx2 = u.shape
    assert mx == mx2
    cxp2, cyp = w1.shape
    assert cxp == cxp2 and cyp % 128 == 0 and cxp % 128 == 0
    assert y_flat.shape == (mp, cyp) and w2.shape == (cyp, cyp)

    _, tm = _choose_row_tiling(mp)
    assert mp % tm == 0
    grid = (mp // tm,)
    b1r = b1.reshape(1, cyp).astype(jnp.float32)
    b2r = b2.reshape(1, cyp).astype(jnp.float32)

    return pl.pallas_call(
        _attention_fused_kernel,
        out_shape=jax.ShapeDtypeStruct((mp, cyp), out_dtype),
        grid=grid,
        in_specs=[
            pl.BlockSpec((mx, cxp), lambda i: (0, 0)),    # x      (resident)
            pl.BlockSpec((cxp, cyp), lambda i: (0, 0)),   # w1     (resident)
            pl.BlockSpec((1, cyp), lambda i: (0, 0)),     # b1
            pl.BlockSpec((tm, mx), lambda i: (i, 0)),     # U rows for this tile
            pl.BlockSpec((tm, cyp), lambda i: (i, 0)),    # y rows (bf16)
            pl.BlockSpec((cyp, cyp), lambda i: (0, 0)),   # w2     (resident)
            pl.BlockSpec((1, cyp), lambda i: (0, 0)),     # b2
        ],
        out_specs=pl.BlockSpec((tm, cyp), lambda i: (i, 0)),
        compiler_params=pltpu.CompilerParams(
            dimension_semantics=("parallel",)),
    )(x_flat, w1, b1r, u, y_flat, w2, b2r)


# ----------------------------------------------------------------------------
# parameters (deterministic, synthetic) — channel dims padded ONCE to 128.
# Zero padding of weights AND biases is required for correctness of the gate.
# ----------------------------------------------------------------------------
def init_attention_params(key, x_channel, y_channel):
    cxp = _round_up(x_channel, 128)
    cyp = _round_up(y_channel, 128)
    k1, k2, k3, k4 = jax.random.split(key, 4)
    w1 = jax.random.normal(k1, (x_channel, y_channel), jnp.float32) / np.sqrt(x_channel)
    b1 = 0.01 * jax.random.normal(k2, (y_channel,), jnp.float32)
    w2 = jax.random.normal(k3, (y_channel, y_channel), jnp.float32) / np.sqrt(y_channel)
    b2 = 0.01 * jax.random.normal(k4, (y_channel,), jnp.float32)

    def padw(w, kp, npad):
        return jnp.pad(w, ((0, kp - w.shape[0]), (0, npad - w.shape[1])))

    return {
        "w1": padw(w1, cxp, cyp).astype(jnp.bfloat16),
        "b1": jnp.pad(b1, (0, cyp - y_channel)),
        "w2": padw(w2, cyp, cyp).astype(jnp.bfloat16),
        "b2": jnp.pad(b2, (0, cyp - y_channel)),
        "cxp": cxp, "cyp": cyp,
        "x_channel": x_channel, "y_channel": y_channel,
        # raw f32 copies for the pure-JAX reference
        "w1_raw": w1, "b1_raw": b1, "w2_raw": w2, "b2_raw": b2,
    }


# ----------------------------------------------------------------------------
# module forward (matches PyTorch Attention.forward; NCHW in / NCHW out)
# ----------------------------------------------------------------------------
def attention_forward(params, x_nchw, y_nchw):
    x = jnp.transpose(x_nchw, (0, 2, 3, 1))          # NHWC
    y = jnp.transpose(y_nchw, (0, 2, 3, 1))
    n, hx, wx, cx = x.shape
    _, hy, wy, cy = y.shape
    cxp, cyp = params["cxp"], params["cyp"]

    # Channel padding to 128-lane multiples (weights/biases padded at init;
    # padded channels stay exactly zero through the whole gated path).
    if cx != cxp:
        x = jnp.pad(x, ((0, 0), (0, 0), (0, 0), (0, cxp - cx)))
    if cy != cyp:
        y = jnp.pad(y, ((0, 0), (0, 0), (0, 0), (0, cyp - cy)))

    mx_rows = n * hx * wx
    my_rows = n * hy * wy
    mp, _ = _choose_row_tiling(my_rows)

    x_flat = x.reshape(mx_rows, cxp).astype(jnp.bfloat16)
    y_flat = y.reshape(my_rows, cyp).astype(jnp.bfloat16)   # bf16 A-operand
    if mp != my_rows:
        # Only hit when N*Hy*Wy needs sublane/tile rounding (not at demo shapes).
        y_flat = jnp.pad(y_flat, ((0, mp - my_rows), (0, 0)))

    u = _bilinear_matrix(n, hx, wx, hy, wy, mp)              # jit constant

    out = attention_fused(x_flat, u, y_flat,
                          params["w1"], params["b1"],
                          params["w2"], params["b2"])
    out = out[:my_rows].reshape(n, hy, wy, cyp)[..., :params["y_channel"]]
    return jnp.transpose(out, (0, 3, 1, 2))                  # back to NCHW


# ----------------------------------------------------------------------------
# pure-JAX reference (mirrors the kernel's deliberate bf16 operand casts)
# ----------------------------------------------------------------------------
def upsample_bilinear_ref(x, out_hw):
    N, H, W, C = x.shape
    Ho, Wo = int(out_hw[0]), int(out_hw[1])
    if (Ho, Wo) == (H, W):
        return x

    def coords(o, i):
        if o == 1:
            return jnp.zeros((1,), jnp.float32)
        return jnp.arange(o, dtype=jnp.float32) * ((i - 1) / (o - 1))

    yy, xx = coords(Ho, H), coords(Wo, W)
    y0 = jnp.clip(jnp.floor(yy).astype(jnp.int32), 0, H - 1)
    y1 = jnp.clip(y0 + 1, 0, H - 1)
    x0 = jnp.clip(jnp.floor(xx).astype(jnp.int32), 0, W - 1)
    x1 = jnp.clip(x0 + 1, 0, W - 1)
    wy = (yy - y0.astype(jnp.float32))[None, :, None, None]
    wx = (xx - x0.astype(jnp.float32))[None, None, :, None]
    a = x[:, y0][:, :, x0]
    b = x[:, y0][:, :, x1]
    c = x[:, y1][:, :, x0]
    d = x[:, y1][:, :, x1]
    top = a * (1.0 - wx) + b * wx
    bot = c * (1.0 - wx) + d * wx
    return top * (1.0 - wy) + bot * wy


def attention_reference(params, x_nchw, y_nchw):
    x = jnp.transpose(x_nchw, (0, 2, 3, 1)).astype(jnp.bfloat16).astype(jnp.float32)
    # mirror the kernel: y is fed as bf16 and lifted back to f32 for the gate
    y = jnp.transpose(y_nchw, (0, 2, 3, 1)).astype(jnp.bfloat16).astype(jnp.float32)
    w1 = params["w1_raw"].astype(jnp.bfloat16).astype(jnp.float32)
    w2 = params["w2_raw"].astype(jnp.bfloat16).astype(jnp.float32)
    z = jnp.einsum("nhwc,cd->nhwd", x, w1,
                   precision=jax.lax.Precision.HIGHEST) + params["b1_raw"]
    zup = upsample_bilinear_ref(z, y.shape[1:3])
    g = jax.nn.sigmoid(jnp.maximum(zup + y, 0.0)) * y
    g = g.astype(jnp.bfloat16).astype(jnp.float32)           # conv2 bf16 operand
    out = jnp.maximum(
        jnp.einsum("nhwc,cd->nhwd", g, w2,
                   precision=jax.lax.Precision.HIGHEST) + params["b2_raw"], 0.0)
    return jnp.transpose(out, (0, 3, 1, 2))


# ----------------------------------------------------------------------------
# demo
# ----------------------------------------------------------------------------
if __name__ == "__main__":
    key = jax.random.PRNGKey(0)
    kx, ky, kp = jax.random.split(key, 3)

    x_channel, y_channel = 48, 32
    batch = 2
    # x is the coarser feature map, y the finer one (conv1(x) is upsampled to y).
    x = jax.random.normal(kx, (batch, x_channel, 8, 8), jnp.float32)      # NCHW
    y = jax.random.normal(ky, (batch, y_channel, 16, 16), jnp.float32)    # NCHW

    params = init_attention_params(kp, x_channel, y_channel)

    @jax.jit
    def fwd(x_, y_):
        return attention_forward(params, x_, y_)

    out = fwd(x, y)
    jax.block_until_ready(out)

    assert out.shape == (batch, y_channel, 16, 16)
    assert bool(jnp.all(jnp.isfinite(out)))
    assert bool(jnp.all(out >= 0.0))             # final ReLU

    ref = attention_reference(params, x, y)
    err = float(jnp.max(jnp.abs(out - ref)))
    assert err < 3e-2, f"max abs err vs reference: {err}"

    print("KERNEL_OK")
</pallas_src>

<mosaic_0001>
module attributes {stable_mosaic.version = 11 : i64} {
  func.func @_attention_fused_kernel(%arg0: i32, %arg1: memref<128x128xbf16, #tpu.memory_space<vmem>>, %arg2: memref<128x128xbf16, #tpu.memory_space<vmem>>, %arg3: memref<1x128xf32, #tpu.memory_space<vmem>>, %arg4: memref<256x128xf32, #tpu.memory_space<vmem>>, %arg5: memref<256x128xbf16, #tpu.memory_space<vmem>>, %arg6: memref<128x128xbf16, #tpu.memory_space<vmem>>, %arg7: memref<1x128xf32, #tpu.memory_space<vmem>>, %arg8: memref<256x128xf32, #tpu.memory_space<vmem>>) attributes {dimension_semantics = [#tpu.dimension_semantics<parallel>], iteration_bounds = array<i64: 2>, scalar_prefetch = 0 : i64, scratch_operands = 0 : i64, tpu.core_type = #tpu.core_type<tc>, window_params = [{pipeline_mode = #tpu.pipeline_mode<synchronous>, transform_indices = @transform_0, window_bounds = array<i64: 128, 128>}, {pipeline_mode = #tpu.pipeline_mode<synchronous>, transform_indices = @transform_1, window_bounds = array<i64: 128, 128>}, {pipeline_mode = #tpu.pipeline_mode<synchronous>, transform_indices = @transform_2, window_bounds = array<i64: 1, 128>}, {transform_indices = @transform_3, window_bounds = array<i64: 256, 128>}, {transform_indices = @transform_4, window_bounds = array<i64: 256, 128>}, {pipeline_mode = #tpu.pipeline_mode<synchronous>, transform_indices = @transform_5, window_bounds = array<i64: 128, 128>}, {pipeline_mode = #tpu.pipeline_mode<synchronous>, transform_indices = @transform_6, window_bounds = array<i64: 1, 128>}, {transform_indices = @transform_7, window_bounds = array<i64: 256, 128>}]} {
    %c0 = arith.constant 0 : index
    %c0_0 = arith.constant 0 : index
    %0 = vector.load %arg1[%c0, %c0_0] : memref<128x128xbf16, #tpu.memory_space<vmem>>, vector<128x128xbf16>
    %c0_1 = arith.constant 0 : index
    %c0_2 = arith.constant 0 : index
    %1 = vector.load %arg2[%c0_1, %c0_2] : memref<128x128xbf16, #tpu.memory_space<vmem>>, vector<128x128xbf16>
    %cst = arith.constant dense<0.000000e+00> : vector<128x128xf32>
    %2 = tpu.matmul %0, %1, %cst {dimension_numbers = #tpu.dot_dimension_numbers<[1], [0], [0], [1], [0, 0, 1, 1], [], []>} : vector<128x128xbf16>, vector<128x128xbf16>, vector<128x128xf32> -> vector<128x128xf32>
    %c0_3 = arith.constant 0 : index
    %c0_4 = arith.constant 0 : index
    %3 = vector.load %arg3[%c0_3, %c0_4] : memref<1x128xf32, #tpu.memory_space<vmem>>, vector<1x128xf32>
    %4 = vector.broadcast %3 : vector<1x128xf32> to vector<128x128xf32>
    %5 = arith.addf %2, %4 : vector<128x128xf32>
    %c0_5 = arith.constant 0 : index
    %c0_6 = arith.constant 0 : index
    %6 = vector.load %arg4[%c0_5, %c0_6] : memref<256x128xf32, #tpu.memory_space<vmem>>, vector<256x128xf32>
    %cst_7 = arith.constant dense<0.000000e+00> : vector<256x128xf32>
    %7 = tpu.matmul %6, %5, %cst_7 {dimension_numbers = #tpu.dot_dimension_numbers<[1], [0], [0], [1], [0, 0, 1, 1], [], []>} : vector<256x128xf32>, vector<128x128xf32>, vector<256x128xf32> -> vector<256x128xf32>
    %c0_8 = arith.constant 0 : index
    %c0_9 = arith.constant 0 : index
    %8 = vector.load %arg5[%c0_8, %c0_9] : memref<256x128xbf16, #tpu.memory_space<vmem>>, vector<256x128xbf16>
    %9 = arith.extf %8 : vector<256x128xbf16> to vector<256x128xf32>
    %10 = arith.addf %7, %9 : vector<256x128xf32>
    %cst_10 = arith.constant 0.000000e+00 : f32
    %11 = vector.broadcast %cst_10 : f32 to vector<256x128xf32>
    %12 = arith.maximumf %10, %11 : vector<256x128xf32>
    %13 = arith.negf %12 : vector<256x128xf32>
    %14 = math.exp %13 : vector<256x128xf32>
    %cst_11 = arith.constant 1.000000e+00 : f32
    %15 = vector.broadcast %cst_11 : f32 to vector<256x128xf32>
    %16 = arith.addf %15, %14 : vector<256x128xf32>
    %17 = arith.divf %15, %16 : vector<256x128xf32>
    %18 = arith.mulf %17, %9 : vector<256x128xf32>
    %19 = arith.truncf %18 : vector<256x128xf32> to vector<256x128xbf16>
    %c0_12 = arith.constant 0 : index
    %c0_13 = arith.constant 0 : index
    %20 = vector.load %arg6[%c0_12, %c0_13] : memref<128x128xbf16, #tpu.memory_space<vmem>>, vector<128x128xbf16>
    %cst_14 = arith.constant dense<0.000000e+00> : vector<256x128xf32>
    %21 = tpu.matmul %19, %20, %cst_14 {dimension_numbers = #tpu.dot_dimension_numbers<[1], [0], [0], [1], [0, 0, 1, 1], [], []>} : vector<256x128xbf16>, vector<128x128xbf16>, vector<256x128xf32> -> vector<256x128xf32>
    %c0_15 = arith.constant 0 : index
    %c0_16 = arith.constant 0 : index
    %22 = vector.load %arg7[%c0_15, %c0_16] : memref<1x128xf32, #tpu.memory_space<vmem>>, vector<1x128xf32>
    %23 = vector.broadcast %22 : vector<1x128xf32> to vector<256x128xf32>
    %24 = arith.addf %21, %23 : vector<256x128xf32>
    %cst_17 = arith.constant 0.000000e+00 : f32
    %25 = vector.broadcast %cst_17 : f32 to vector<256x128xf32>
    %26 = arith.maximumf %24, %25 : vector<256x128xf32>
    %c0_18 = arith.constant 0 : index
    %c0_19 = arith.constant 0 : index
    %27 = vector.load %arg8[%c0_18, %c0_19] : memref<256x128xf32, #tpu.memory_space<vmem>>, vector<256x128xf32>
    tpu.vector_store %arg8[%c0_18, %c0_19], %26 {strides = array<i32>} : memref<256x128xf32, #tpu.memory_space<vmem>>, vector<256x128xf32>,
    return
  }
  func.func @transform_0(%arg0: i32) -> (i32, i32) {
    %c0_i32 = arith.constant 0 : i32
    %c0_i32_0 = arith.constant 0 : i32
    %c0_i32_1 = arith.constant 0 : i32
    return %c0_i32, %c0_i32_0 : i32, i32
  }
  func.func @transform_1(%arg0: i32) -> (i32, i32) {
    %c0_i32 = arith.constant 0 : i32
    %c0_i32_0 = arith.constant 0 : i32
    %c0_i32_1 = arith.constant 0 : i32
    return %c0_i32, %c0_i32_0 : i32, i32
  }
  func.func @transform_2(%arg0: i32) -> (i32, i32) {
    %c0_i32 = arith.constant 0 : i32
    %c0_i32_0 = arith.constant 0 : i32
    %c0_i32_1 = arith.constant 0 : i32
    return %c0_i32, %c0_i32_0 : i32, i32
  }
  func.func @transform_3(%arg0: i32) -> (i32, i32) {
    %c0_i32 = arith.constant 0 : i32
    %c0_i32_0 = arith.constant 0 : i32
    return %arg0, %c0_i32 : i32, i32
  }
  func.func @transform_4(%arg0: i32) -> (i32, i32) {
    %c0_i32 = arith.constant 0 : i32
    %c0_i32_0 = arith.constant 0 : i32
    return %arg0, %c0_i32 : i32, i32
  }
  func.func @transform_5(%arg0: i32) -> (i32, i32) {
    %c0_i32 = arith.constant 0 : i32
    %c0_i32_0 = arith.constant 0 : i32
    %c0_i32_1 = arith.constant 0 : i32
    return %c0_i32, %c0_i32_0 : i32, i32
  }
  func.func @transform_6(%arg0: i32) -> (i32, i32) {
    %c0_i32 = arith.constant 0 : i32
    %c0_i32_0 = arith.constant 0 : i32
    %c0_i32_1 = arith.constant 0 : i32
    return %c0_i32, %c0_i32_0 : i32, i32
  }
  func.func @transform_7(%arg0: i32) -> (i32, i32) {
    %c0_i32 = arith.constant 0 : i32
    %c0_i32_0 = arith.constant 0 : i32
    return %arg0, %c0_i32 : i32, i32
  }
}

</mosaic_0001>

<llo_original>
// kernel: fwd.1
$region0: #{fwd.1}
  #allocation0 [shape = 'u32[]', space=smem, size = 0x4, offset = 0x4, fixed_abs, tag = 'smem constant byte address 0x4 - core index']
  #allocation1 [shape = 'u32[144,128]{1,0:T(1,128)}', space=vmem, size = 0x12000, scoped, tag = 'internal scratch']
  %s0 = inlined_call_operand.vmem [shape: bf16[128,128], index: 0, kind: input, shape index: {}]
  %s1 = inlined_call_operand.vmem [shape: bf16[128,128], index: 1, kind: input, shape index: {}]
  %s2 = inlined_call_operand.vmem [shape: f32[1,128], index: 2, kind: input, shape index: {}]
  %s3 = inlined_call_operand.vmem [shape: f32[512,128], index: 3, kind: input, shape index: {}]
  %s4 = inlined_call_operand.vmem [shape: bf16[512,128], index: 4, kind: input, shape index: {}]
  %s5 = inlined_call_operand.vmem [shape: bf16[128,128], index: 5, kind: input, shape index: {}]
  %s6 = inlined_call_operand.vmem [shape: f32[1,128], index: 6, kind: input, shape index: {}]
  %s7 = inlined_call_operand.vmem [shape: f32[512,128], index: 7, kind: output, shape index: {}]
  %s8 = sld [smem:[#allocation0]]
  $region61: #{fwd.1} parent=0
    _
  %s10 = ssub.s32 1, %s8
  %s11 = scalar_select 0, %s10, %s8
  loop: start=0, step=1, limit=4
  $region2: #{fwd.1} parent=0 // loop_pre_header
    _
  $region3: #{fwd.1} parent=0 // loop_header
    %s13 = sphi 0, %s17
    %p14 = scmp.ge.s32.totalorder %s13, 4
    %s21 = sphi 0, %s21
    %s23 = sphi 0, %s21
    %s24 = sphi 0, %s23
    %s38 = sphi 0, %s24
    %s42 = sphi 0, %s42
    %s44 = sphi 0, %s42
    %s45 = sphi 0, %s44
    %s59 = sphi 0, %s45
    %s63 = sphi 0, %s63
    %s65 = sphi 0, %s63
    %s66 = sphi 0, %s65
    %s80 = sphi 0, %s66
    %s86 = sphi 0, %s88
    %s89 = sphi 0, %s86
    %s90 = sphi 0, %s89
    %s106 = sphi 0, %s90
    %s112 = sphi 0, %s114
    %s115 = sphi 0, %s112
    %s116 = sphi 0, %s115
    %s132 = sphi 0, %s116
    %s136 = sphi 0, %s136
    %s138 = sphi 0, %s136
    %s139 = sphi 0, %s138
    %s153 = sphi 0, %s139
    %s157 = sphi 0, %s157
    %s159 = sphi 0, %s157
    %s160 = sphi 0, %s159
    %s174 = sphi 0, %s160
    %s180 = sphi 0, %s182
    %s183 = sphi 0, %s180
    %s184 = sphi 0, %s183
    %s200 = sphi 0, %s184
  $region4: #{fwd.1} parent=0 // loop_header_branch
    %16 = sbr.rel (%p14) target = $region8
  $region5: #{fwd.1} parent=0 // loop_body
    %s18 = ssub.s32 %s13, 1
    %s19 = ssub.s32 %s13, 2
    %s20 = sadd.s32 %s13, 1
    %s22 = sadd.s32 %s21, 1
    %p25 = scmp.eq.s32.totalorder %s13, 1
    %p26 = scmp.ne.s32.totalorder %s21, %s23
    %p27 = scmp.eq.s32.totalorder %s13, 0
    %p28 = por %p26, %p27
    %p29 = scmp.ne.s32.totalorder %s21, %s23
    %p30 = scmp.eq.s32.totalorder %s18, 1
    %p31 = por %p29, %p30
    %p32 = scmp.ne.s32.totalorder %s23, %s24
    %p33 = scmp.eq.s32.totalorder %s18, 0
    %p34 = por %p32, %p33
    %p35 = scmp.ne.s32.totalorder %s23, %s24
    %p36 = scmp.eq.s32.totalorder %s19, 1
    %p37 = por %p35, %p36
    %p39 = scmp.ne.s32.totalorder %s24, %s38
    %p40 = scmp.eq.s32.totalorder %s19, 0
    %p41 = por %p39, %p40
    %s43 = sadd.s32 %s42, 1
    %p46 = scmp.eq.s32.totalorder %s13, 1
    %p47 = scmp.ne.s32.totalorder %s42, %s44
    %p48 = scmp.eq.s32.totalorder %s13, 0
    %p49 = por %p47, %p48
    %p50 = scmp.ne.s32.totalorder %s42, %s44
    %p51 = scmp.eq.s32.totalorder %s18, 1
    %p52 = por %p50, %p51
    %p53 = scmp.ne.s32.totalorder %s44, %s45
    %p54 = scmp.eq.s32.totalorder %s18, 0
    %p55 = por %p53, %p54
    %p56 = scmp.ne.s32.totalorder %s44, %s45
    %p57 = scmp.eq.s32.totalorder %s19, 1
    %p58 = por %p56, %p57
    %p60 = scmp.ne.s32.totalorder %s45, %s59
    %p61 = scmp.eq.s32.totalorder %s19, 0
    %p62 = por %p60, %p61
    %s64 = sadd.s32 %s63, 1
    %p67 = scmp.eq.s32.totalorder %s13, 1
    %p68 = scmp.ne.s32.totalorder %s63, %s65
    %p69 = scmp.eq.s32.totalorder %s13, 0
    %p70 = por %p68, %p69
    %p71 = scmp.ne.s32.totalorder %s63, %s65
    %p72 = scmp.eq.s32.totalorder %s18, 1
    %p73 = por %p71, %p72
    %p74 = scmp.ne.s32.totalorder %s65, %s66
    %p75 = scmp.eq.s32.totalorder %s18, 0
    %p76 = por %p74, %p75
    %p77 = scmp.ne.s32.totalorder %s65, %s66
    %p78 = scmp.eq.s32.totalorder %s19, 1
    %p79 = por %p77, %p78
    %p81 = scmp.ne.s32.totalorder %s66, %s80
    %p82 = scmp.eq.s32.totalorder %s19, 0
    %p83 = por %p81, %p82
    %s84 = ssub.s32 %s13, %s20
    %p85 = scmp.eq.s32.totalorder %s84, 0
    %s87 = sadd.s32 %s86, 1
    %s88 = scalar_select %p85, %s86, %s87
    %p91 = pneg %p85
    %p92 = scmp.eq.s32.totalorder %s13, 1
    %p93 = por %p91, %p92
    %p94 = scmp.ne.s32.totalorder %s86, %s89
    %p95 = scmp.eq.s32.totalorder %s13, 0
    %p96 = por %p94, %p95
    %p97 = scmp.ne.s32.totalorder %s86, %s89
    %p98 = scmp.eq.s32.totalorder %s18, 1
    %p99 = por %p97, %p98
    %p100 = scmp.ne.s32.totalorder %s89, %s90
    %p101 = scmp.eq.s32.totalorder %s18, 0
    %p102 = por %p100, %p101
    %p103 = scmp.ne.s32.totalorder %s89, %s90
    %p104 = scmp.eq.s32.totalorder %s19, 1
    %p105 = por %p103, %p104
    %p107 = scmp.ne.s32.totalorder %s90, %s106
    %p108 = scmp.eq.s32.totalorder %s19, 0
    %p109 = por %p107, %p108
    %s110 = ssub.s32 %s13, %s20
    %p111 = scmp.eq.s32.totalorder %s110, 0
    %s113 = sadd.s32 %s112, 1
    %s114 = scalar_select %p111, %s112, %s113
    %p117 = pneg %p111
    %p118 = scmp.eq.s32.totalorder %s13, 1
    %p119 = por %p117, %p118
    %p120 = scmp.ne.s32.totalorder %s112, %s115
    %p121 = scmp.eq.s32.totalorder %s13, 0
    %p122 = por %p120, %p121
    %p123 = scmp.ne.s32.totalorder %s112, %s115
    %p124 = scmp.eq.s32.totalorder %s18, 1
    %p125 = por %p123, %p124
    %p126 = scmp.ne.s32.totalorder %s115, %s116
    %p127 = scmp.eq.s32.totalorder %s18, 0
    %p128 = por %p126, %p127
    %p129 = scmp.ne.s32.totalorder %s115, %s116
    %p130 = scmp.eq.s32.totalorder %s19, 1
    %p131 = por %p129, %p130
    %p133 = scmp.ne.s32.totalorder %s116, %s132
    %p134 = scmp.eq.s32.totalorder %s19, 0
    %p135 = por %p133, %p134
    %s137 = sadd.s32 %s136, 1
    %p140 = scmp.eq.s32.totalorder %s13, 1
    %p141 = scmp.ne.s32.totalorder %s136, %s138
    %p142 = scmp.eq.s32.totalorder %s13, 0
    %p143 = por %p141, %p142
    %p144 = scmp.ne.s32.totalorder %s136, %s138
    %p145 = scmp.eq.s32.totalorder %s18, 1
    %p146 = por %p144, %p145
    %p147 = scmp.ne.s32.totalorder %s138, %s139
    %p148 = scmp.eq.s32.totalorder %s18, 0
    %p149 = por %p147, %p148
    %p150 = scmp.ne.s32.totalorder %s138, %s139
    %p151 = scmp.eq.s32.totalorder %s19, 1
    %p152 = por %p150, %p151
    %p154 = scmp.ne.s32.totalorder %s139, %s153
    %p155 = scmp.eq.s32.totalorder %s19, 0
    %p156 = por %p154, %p155
    %s158 = sadd.s32 %s157, 1
    %p161 = scmp.eq.s32.totalorder %s13, 1
    %p162 = scmp.ne.s32.totalorder %s157, %s159
    %p163 = scmp.eq.s32.totalorder %s13, 0
    %p164 = por %p162, %p163
    %p165 = scmp.ne.s32.totalorder %s157, %s159
    %p166 = scmp.eq.s32.totalorder %s18, 1
    %p167 = por %p165, %p166
    %p168 = scmp.ne.s32.totalorder %s159, %s160
    %p169 = scmp.eq.s32.totalorder %s18, 0
    %p170 = por %p168, %p169
    %p171 = scmp.ne.s32.totalorder %s159, %s160
    %p172 = scmp.eq.s32.totalorder %s19, 1
    %p173 = por %p171, %p172
    %p175 = scmp.ne.s32.totalorder %s160, %s174
    %p176 = scmp.eq.s32.totalorder %s19, 0
    %p177 = por %p175, %p176
    %s178 = ssub.s32 %s13, %s20
    %p179 = scmp.eq.s32.totalorder %s178, 0
    %s181 = sadd.s32 %s180, 1
    %s182 = scalar_select %p179, %s180, %s181
    %p185 = pneg %p179
    %p186 = scmp.eq.s32.totalorder %s13, 1
    %p187 = por %p185, %p186
    %p188 = scmp.ne.s32.totalorder %s180, %s183
    %p189 = scmp.eq.s32.totalorder %s13, 0
    %p190 = por %p188, %p189
    %p191 = scmp.ne.s32.totalorder %s180, %s183
    %p192 = scmp.eq.s32.totalorder %s18, 1
    %p193 = por %p191, %p192
    %p194 = scmp.ne.s32.totalorder %s183, %s184
    %p195 = scmp.eq.s32.totalorder %s18, 0
    %p196 = por %p194, %p195
    %p197 = scmp.ne.s32.totalorder %s183, %s184
    %p198 = scmp.eq.s32.totalorder %s19, 1
    %p199 = por %p197, %p198
    %p201 = scmp.ne.s32.totalorder %s184, %s200
    %p202 = scmp.eq.s32.totalorder %s19, 0
    %p203 = por %p201, %p202
    %p204 = scmp.le.s32.totalorder 1, %s13
    %p205 = scmp.lt.s32.totalorder %s13, 3
    %p206 = pnand %p204, %p205
    %p207 = pneg %p206
    // Predicated region
    $region9: #{fwd.1} parent=5 // pred_check
      _
    $region10: #{fwd.1} parent=5 // pred_check_branch
      %209 = sbr.rel (%p206) target = $region12
    $region11: #{fwd.1} parent=5 // pred_region
      %s210 = ssub.s32 %s13, 1
      // Predicated region
      $region13: #{fwd.1} parent=11 // pred_check
        %p211 = pneg %p34
      $region14: #{fwd.1} parent=11 // pred_check_branch
        %213 = sbr.rel (%p211) target = $region16
      $region15: #{fwd.1} parent=11 // pred_region
        _
      $region16: #{fwd.1} parent=11 // pred_fallthru
        _
      // Predicated region
      $region17: #{fwd.1} parent=11 // pred_check
        %p214 = pneg %p55
      $region18: #{fwd.1} parent=11 // pred_check_branch
        %216 = sbr.rel (%p214) target = $region20
      $region19: #{fwd.1} parent=11 // pred_region
        _
      $region20: #{fwd.1} parent=11 // pred_fallthru
        _
      // Predicated region
      $region21: #{fwd.1} parent=11 // pred_check
        %p217 = pneg %p76
      $region22: #{fwd.1} parent=11 // pred_check_branch
        %219 = sbr.rel (%p217) target = $region24
      $region23: #{fwd.1} parent=11 // pred_region
        _
      $region24: #{fwd.1} parent=11 // pred_fallthru
        _
      // Predicated region
      $region25: #{fwd.1} parent=11 // pred_check
        %p220 = pneg %p149
      $region26: #{fwd.1} parent=11 // pred_check_branch
        %222 = sbr.rel (%p220) target = $region28
      $region27: #{fwd.1} parent=11 // pred_region
        _
      $region28: #{fwd.1} parent=11 // pred_fallthru
        _
      // Predicated region
      $region29: #{fwd.1} parent=11 // pred_check
        %p223 = pneg %p170
      $region30: #{fwd.1} parent=11 // pred_check_branch
        %225 = sbr.rel (%p223) target = $region32
      $region31: #{fwd.1} parent=11 // pred_region
        _
      $region32: #{fwd.1} parent=11 // pred_fallthru
        _
    $region12: #{fwd.1} parent=5 // pred_fallthru
      _
    %p226 = scmp.lt.s32.totalorder %s13, 2
    // Predicated region
    $region33: #{fwd.1} parent=5 // pred_check
      %p227 = pneg %p226
    $region34: #{fwd.1} parent=5 // pred_check_branch
      %229 = sbr.rel (%p227) target = $region36
    $region35: #{fwd.1} parent=5 // pred_region
      // Predicated region
      $region37: #{fwd.1} parent=35 // pred_check
        %p230 = pneg %p96
      $region38: #{fwd.1} parent=35 // pred_check_branch
        %232 = sbr.rel (%p230) target = $region40
      $region39: #{fwd.1} parent=35 // pred_region
        %s233 = smul.u32 32, %s13
        %p234 = scmp.lt.s32.totalorder %s233, 63
        %s235 = scalar_select %p234, %s233, 63
        %s236 = smul.addr %s235, 8
        %s237 = scalar_lea.vmem %s3, %s236
        %s238 = smul.u32 32, %s13
      $region40: #{fwd.1} parent=35 // pred_fallthru
        _
      // Predicated region
      $region41: #{fwd.1} parent=35 // pred_check
        %p239 = pneg %p122
      $region42: #{fwd.1} parent=35 // pred_check_branch
        %241 = sbr.rel (%p239) target = $region44
      $region43: #{fwd.1} parent=35 // pred_region
        %s242 = smul.u32 32, %s13
        %p243 = scmp.lt.s32.totalorder %s242, 63
        %s244 = scalar_select %p243, %s242, 63
        %s245 = smul.addr %s244, 4
        %s246 = scalar_lea.vmem %s4, %s245
        %s247 = smul.u32 32, %s13
      $region44: #{fwd.1} parent=35 // pred_fallthru
        _
    $region36: #{fwd.1} parent=5 // pred_fallthru
      _
    %p248 = scmp.le.s32.totalorder 1, %s13
    %p249 = scmp.lt.s32.totalorder %s13, 3
    %p250 = pnand %p248, %p249
    %p251 = pneg %p250
    // Predicated region
    $region45: #{fwd.1} parent=5 // pred_check
      _
    $region46: #{fwd.1} parent=5 // pred_check_branch
      %253 = sbr.rel (%p250) target = $region48
    $region47: #{fwd.1} parent=5 // pred_region
      %s254 = ssub.s32 %s13, 1
      %p255 = pneg %p34
      %p256 = pneg %p31
      %p257 = pneg %p55
      %p258 = pneg %p52
      %p259 = pneg %p76
      %p260 = pneg %p73
      %s261 = smul.u32 32, %s18
      %p262 = scmp.lt.s32.totalorder %s261, 63
      %s263 = scalar_select %p262, %s261, 63
      %s264 = smul.addr %s263, 8
      %s265 = scalar_lea.vmem %s3, %s264
      %p266 = pneg %p102
      %p267 = pneg %p99
      %s268 = smul.u32 32, %s18
      %p269 = scmp.lt.s32.totalorder %s268, 63
      %s270 = scalar_select %p269, %s268, 63
      %s271 = smul.addr %s270, 4
      %s272 = scalar_lea.vmem %s4, %s271
      %p273 = pneg %p128
      %p274 = pneg %p125
      %p275 = pneg %p149
      %p276 = pneg %p146
      %p277 = pneg %p170
      %p278 = pneg %p167
      %p279 = pneg %p196
      %p280 = pneg %p193
      %s281 = smul.u32 32, %s18
      %p282 = scmp.lt.s32.totalorder %s281, 63
      %s283 = scalar_select %p282, %s281, 63
      %s284 = smul.addr %s283, 8
      %s285 = scalar_lea.vmem %s7, %s284
      %s286 = smul.u32 32, %s18
      %p287 = scmp.lt.s32.totalorder %s286, 63
      %s288 = scalar_select %p287, %s286, 63
      %s289 = smul.addr %s288, 8
      %s290 = scalar_lea.vmem %s3, %s289
      %s291 = smul.u32 32, %s18
      %s292 = smul.u32 32, %s18
      %p293 = scmp.lt.s32.totalorder %s292, 63
      %s294 = scalar_select %p293, %s292, 63
      %s295 = smul.addr %s294, 4
      %s296 = scalar_lea.vmem %s4, %s295
      %s297 = smul.u32 32, %s18
      %s298 = smul.u32 32, %s18
      %p299 = scmp.lt.s32.totalorder %s298, 63
      %s300 = scalar_select %p299, %s298, 63
      %s301 = smul.addr %s300, 8
      %s302 = scalar_lea.vmem %s7, %s301
      %s303 = smul.u32 32, %s18
      %v305 = vld [vmem:[%s0] sm:$0xf]
      %v306 = vld [vmem:[%s0 + $0x4] sm:$0xf]
      %v307 = vld [vmem:[%s0 + $0x8] sm:$0xf]
      %v308 = vld [vmem:[%s0 + $0xc] sm:$0xf]
      %v309 = vld [vmem:[%s0 + $0x10] sm:$0xf]
      %v310 = vld [vmem:[%s0 + $0x14] sm:$0xf]
      %v311 = vld [vmem:[%s0 + $0x18] sm:$0xf]
      %v312 = vld [vmem:[%s0 + $0x1c] sm:$0xf]
      %v313 = vld [vmem:[%s0 + $0x20] sm:$0xf]
      %v314 = vld [vmem:[%s0 + $0x24] sm:$0xf]
      %v315 = vld [vmem:[%s0 + $0x28] sm:$0xf]
      %v316 = vld [vmem:[%s0 + $0x2c] sm:$0xf]
      %v317 = vld [vmem:[%s0 + $0x30] sm:$0xf]
      %v318 = vld [vmem:[%s0 + $0x34] sm:$0xf]
      %v319 = vld [vmem:[%s0 + $0x38] sm:$0xf]
      %v320 = vld [vmem:[%s0 + $0x3c] sm:$0xf]
      %v321 = vld [vmem:[%s1] sm:$0xf]
      %v322 = vld [vmem:[%s1 + $0x4] sm:$0xf]
      %v323 = vld [vmem:[%s1 + $0x8] sm:$0xf]
      %v324 = vld [vmem:[%s1 + $0xc] sm:$0xf]
      %v325 = vld [vmem:[%s1 + $0x10] sm:$0xf]
      %v326 = vld [vmem:[%s1 + $0x14] sm:$0xf]
      %v327 = vld [vmem:[%s1 + $0x18] sm:$0xf]
      %v328 = vld [vmem:[%s1 + $0x1c] sm:$0xf]
      %v329 = vld [vmem:[%s1 + $0x20] sm:$0xf]
      %v330 = vld [vmem:[%s1 + $0x24] sm:$0xf]
      %v331 = vld [vmem:[%s1 + $0x28] sm:$0xf]
      %v332 = vld [vmem:[%s1 + $0x2c] sm:$0xf]
      %v333 = vld [vmem:[%s1 + $0x30] sm:$0xf]
      %v334 = vld [vmem:[%s1 + $0x34] sm:$0xf]
      %v335 = vld [vmem:[%s1 + $0x38] sm:$0xf]
      %v336 = vld [vmem:[%s1 + $0x3c] sm:$0xf]
      %v337 = vld [vmem:[%s2] sm:$0x1]
      %v339 = vlaneseq
      %v340 = vshrl.u32 %v339, 7
      %v341 = vsub.s32 0, %v340
      %v342 = vrot.slane %v337, %v341
      %v360 = vunpack.c.l.b16 %v305
      %v361 = vunpack.c.l.b16 %v306
      %v362 = vunpack.c.l.b16 %v307
      %v363 = vunpack.c.l.b16 %v308
      %v364 = vunpack.c.l.b16 %v309
      %v365 = vunpack.c.l.b16 %v310
      %v366 = vunpack.c.l.b16 %v311
      %v367 = vunpack.c.l.b16 %v312
      %v368 = vunpack.c.l.b16 %v313
      %v369 = vunpack.c.l.b16 %v314
      %v370 = vunpack.c.l.b16 %v315
      %v371 = vunpack.c.l.b16 %v316
      %v372 = vunpack.c.l.b16 %v317
      %v373 = vunpack.c.l.b16 %v318
      %v374 = vunpack.c.l.b16 %v319
      %v375 = vunpack.c.l.b16 %v320
      %v376 = vpack.c.b16 %v361, %v360
      %v377 = vpack.c.b16 %v363, %v362
      %v378 = vpack.c.b16 %v365, %v364
      %v379 = vpack.c.b16 %v367, %v366
      %v380 = vpack.c.b16 %v369, %v368
      %v381 = vpack.c.b16 %v371, %v370
      %v382 = vpack.c.b16 %v373, %v372
      %v383 = vpack.c.b16 %v375, %v374
      %v408 = vunpack.c.l.b16 %v321
      %v409 = vunpack.c.l.b16 %v322
      %v410 = vunpack.c.l.b16 %v323
      %v411 = vunpack.c.l.b16 %v324
      %v412 = vunpack.c.l.b16 %v325
      %v413 = vunpack.c.l.b16 %v326
      %v414 = vunpack.c.l.b16 %v327
      %v415 = vunpack.c.l.b16 %v328
      %v416 = vunpack.c.l.b16 %v329
      %v417 = vunpack.c.l.b16 %v330
      %v418 = vunpack.c.l.b16 %v331
      %v419 = vunpack.c.l.b16 %v332
      %v420 = vunpack.c.l.b16 %v333
      %v421 = vunpack.c.l.b16 %v334
      %v422 = vunpack.c.l.b16 %v335
      %v423 = vunpack.c.l.b16 %v336
      %v424 = vpack.c.b16 %v409, %v408
      %v425 = vpack.c.b16 %v411, %v410
      %v426 = vpack.c.b16 %v413, %v412
      %v427 = vpack.c.b16 %v415, %v414
      %v428 = vpack.c.b16 %v417, %v416
      %v429 = vpack.c.b16 %v419, %v418
      %v430 = vpack.c.b16 %v421, %v420
      %v431 = vpack.c.b16 %v423, %v422
      %440 = vmatprep.subr.bf16.mxu0 0
      %441 = vmatpush1.bf16.msra.mxu0 %v424
      %442 = vmatprep.subr.bf16.mxu0 0
      %443 = vmatpush1.bf16.msra.mxu0 %v425
      %444 = vmatprep.subr.bf16.mxu0 0
      %445 = vmatpush1.bf16.msra.mxu0 %v426
      %446 = vmatprep.subr.bf16.mxu0 0
      %447 = vmatpush1.bf16.msra.mxu0 %v427
      %448 = vmatprep.subr.bf16.mxu0 0
      %449 = vmatpush1.bf16.msra.mxu0 %v428
      %450 = vmatprep.subr.bf16.mxu0 0
      %451 = vmatpush1.bf16.msra.mxu0 %v429
      %452 = vmatprep.subr.bf16.mxu0 0
      %453 = vmatpush1.bf16.msra.mxu0 %v430
      %454 = vmatprep.subr.bf16.mxu0 0
      %455 = vmatpush1.bf16.msra.mxu0 %v431
      %456 = vmatprep.subr.bf16.mxu0 0
      %457 = vmatpush1.bf16.msra.mxu0 0
      %458 = vmatprep.subr.bf16.mxu0 0
      %459 = vmatpush1.bf16.msra.mxu0 0
      %460 = vmatprep.subr.bf16.mxu0 0
      %461 = vmatpush1.bf16.msra.mxu0 0
      %462 = vmatprep.subr.bf16.mxu0 0
      %463 = vmatpush1.bf16.msra.mxu0 0
      %464 = vmatprep.subr.bf16.mxu0 0
      %465 = vmatpush1.bf16.msra.mxu0 0
      %466 = vmatprep.subr.bf16.mxu0 0
      %467 = vmatpush1.bf16.msra.mxu0 0
      %468 = vmatprep.subr.bf16.mxu0 0
      %469 = vmatpush1.bf16.msra.mxu0 0
      %470 = vmatprep.subr.bf16.mxu0 0
      %471 = vmatpush1.bf16.msra.mxu0 0
      %472 = vmatprep.mubr.bf16.mxu0 0
      %473 = vmatmul.mubr.bf16.gmra.mrb[0].mxu0 %v376
      %v474 = vpop.f32.mrb[0].mxu0
      %v475 = vadd.f32 %v342, %v474
      %v476 = vpop.f32.mrb[0].mxu0
      %v477 = vpop.f32.mrb[0].mxu0
      %v478 = vadd.f32 %v342, %v477
      %v479 = vpop.f32.mrb[0].mxu0
      %480 = vmatprep.mubr.bf16.mxu0 0
      %481 = vmatmul.mubr.bf16.gmra.mrb[0].mxu0 %v377
      %v482 = vpop.f32.mrb[0].mxu0
      %v483 = vadd.f32 %v342, %v482
      %v484 = vpop.f32.mrb[0].mxu0
      %v485 = vpop.f32.mrb[0].mxu0
      %v486 = vadd.f32 %v342, %v485
      %v487 = vpop.f32.mrb[0].mxu0
      %488 = vmatprep.mubr.bf16.mxu0 0
      %489 = vmatmul.mubr.bf16.gmra.mrb[0].mxu0 %v378
      %v490 = vpop.f32.mrb[0].mxu0
      %v491 = vadd.f32 %v342, %v490
      %v492 = vpop.f32.mrb[0].mxu0
      %v493 = vpop.f32.mrb[0].mxu0
      %v494 = vadd.f32 %v342, %v493
      %v495 = vpop.f32.mrb[0].mxu0
      %496 = vmatprep.mubr.bf16.mxu0 0
      %497 = vmatmul.mubr.bf16.gmra.mrb[0].mxu0 %v379
      %v498 = vpop.f32.mrb[0].mxu0
      %v499 = vadd.f32 %v342, %v498
      %v500 = vpop.f32.mrb[0].mxu0
      %v501 = vpop.f32.mrb[0].mxu0
      %v502 = vadd.f32 %v342, %v501
      %v503 = vpop.f32.mrb[0].mxu0
      %504 = vmatprep.mubr.bf16.mxu0 0
      %505 = vmatmul.mubr.bf16.gmra.mrb[0].mxu0 %v380
      %v506 = vpop.f32.mrb[0].mxu0
      %v507 = vadd.f32 %v342, %v506
      %v508 = vpop.f32.mrb[0].mxu0
      %v509 = vpop.f32.mrb[0].mxu0
      %v510 = vadd.f32 %v342, %v509
      %v511 = vpop.f32.mrb[0].mxu0
      %512 = vmatprep.mubr.bf16.mxu0 0
      %513 = vmatmul.mubr.bf16.gmra.mrb[0].mxu0 %v381
      %v514 = vpop.f32.mrb[0].mxu0
      %v515 = vadd.f32 %v342, %v514
      %v516 = vpop.f32.mrb[0].mxu0
      %v517 = vpop.f32.mrb[0].mxu0
      %v518 = vadd.f32 %v342, %v517
      %v519 = vpop.f32.mrb[0].mxu0
      %520 = vmatprep.mubr.bf16.mxu0 0
      %521 = vmatmul.mubr.bf16.gmra.mrb[0].mxu0 %v382
      %v522 = vpop.f32.mrb[0].mxu0
      %v523 = vadd.f32 %v342, %v522
      %v524 = vpop.f32.mrb[0].mxu0
      %v525 = vpop.f32.mrb[0].mxu0
      %v526 = vadd.f32 %v342, %v525
      %v527 = vpop.f32.mrb[0].mxu0
      %528 = vmatprep.mubr.bf16.mxu0 0
      %529 = vmatmul.mubr.bf16.gmra.mrb[0].mxu0 %v383
      %v530 = vpop.f32.mrb[0].mxu0
      %v531 = vadd.f32 %v342, %v530
      %v532 = vpop.f32.mrb[0].mxu0
      %v533 = vpop.f32.mrb[0].mxu0
      %v534 = vadd.f32 %v342, %v533
      %v535 = vpop.f32.mrb[0].mxu0
      %536 = vdwg.mxu0
      %v537 = vld [vmem:[%s290] sm:$0xff]
      %v538 = vld [vmem:[%s290 + $0x8] sm:$0xff]
      %v539 = vld [vmem:[%s290 + $0x10] sm:$0xff]
      %v540 = vld [vmem:[%s290 + $0x18] sm:$0xff]
      %v541 = vld [vmem:[%s290 + $0x20] sm:$0xff]
      %v542 = vld [vmem:[%s290 + $0x28] sm:$0xff]
      %v543 = vld [vmem:[%s290 + $0x30] sm:$0xff]
      %v544 = vld [vmem:[%s290 + $0x38] sm:$0xff]
      %v545 = vld [vmem:[%s290 + $0x40] sm:$0xff]
      %v546 = vld [vmem:[%s290 + $0x48] sm:$0xff]
      %v547 = vld [vmem:[%s290 + $0x50] sm:$0xff]
      %v548 = vld [vmem:[%s290 + $0x58] sm:$0xff]
      %v549 = vld [vmem:[%s290 + $0x60] sm:$0xff]
      %v550 = vld [vmem:[%s290 + $0x68] sm:$0xff]
      %v551 = vld [vmem:[%s290 + $0x70] sm:$0xff]
      %v552 = vld [vmem:[%s290 + $0x78] sm:$0xff]
      %v553 = vld [vmem:[%s290 + $0x80] sm:$0xff]
      %v554 = vld [vmem:[%s290 + $0x88] sm:$0xff]
      %v555 = vld [vmem:[%s290 + $0x90] sm:$0xff]
      %v556 = vld [vmem:[%s290 + $0x98] sm:$0xff]
      %v557 = vld [vmem:[%s290 + $0xa0] sm:$0xff]
      %v558 = vld [vmem:[%s290 + $0xa8] sm:$0xff]
      %v559 = vld [vmem:[%s290 + $0xb0] sm:$0xff]
      %v560 = vld [vmem:[%s290 + $0xb8] sm:$0xff]
      %v561 = vld [vmem:[%s290 + $0xc0] sm:$0xff]
      %v562 = vld [vmem:[%s290 + $0xc8] sm:$0xff]
      %v563 = vld [vmem:[%s290 + $0xd0] sm:$0xff]
      %v564 = vld [vmem:[%s290 + $0xd8] sm:$0xff]
      %v565 = vld [vmem:[%s290 + $0xe0] sm:$0xff]
      %v566 = vld [vmem:[%s290 + $0xe8] sm:$0xff]
      %v567 = vld [vmem:[%s290 + $0xf0] sm:$0xff]
      %v568 = vld [vmem:[%s290 + $0xf8] sm:$0xff]
      %v569 = vld [vmem:[%s296] sm:$0xf]
      %v570 = vld [vmem:[%s296 + $0x4] sm:$0xf]
      %v571 = vld [vmem:[%s296 + $0x8] sm:$0xf]
      %v572 = vld [vmem:[%s296 + $0xc] sm:$0xf]
      %v573 = vld [vmem:[%s296 + $0x10] sm:$0xf]
      %v574 = vld [vmem:[%s296 + $0x14] sm:$0xf]
      %v575 = vld [vmem:[%s296 + $0x18] sm:$0xf]
      %v576 = vld [vmem:[%s296 + $0x1c] sm:$0xf]
      %v577 = vld [vmem:[%s296 + $0x20] sm:$0xf]
      %v578 = vld [vmem:[%s296 + $0x24] sm:$0xf]
      %v579 = vld [vmem:[%s296 + $0x28] sm:$0xf]
      %v580 = vld [vmem:[%s296 + $0x2c] sm:$0xf]
      %v581 = vld [vmem:[%s296 + $0x30] sm:$0xf]
      %v582 = vld [vmem:[%s296 + $0x34] sm:$0xf]
      %v583 = vld [vmem:[%s296 + $0x38] sm:$0xf]
      %v584 = vld [vmem:[%s296 + $0x3c] sm:$0xf]
      %v585 = vld [vmem:[%s296 + $0x40] sm:$0xf]
      %v586 = vld [vmem:[%s296 + $0x44] sm:$0xf]
      %v587 = vld [vmem:[%s296 + $0x48] sm:$0xf]
      %v588 = vld [vmem:[%s296 + $0x4c] sm:$0xf]
      %v589 = vld [vmem:[%s296 + $0x50] sm:$0xf]
      %v590 = vld [vmem:[%s296 + $0x54] sm:$0xf]
      %v591 = vld [vmem:[%s296 + $0x58] sm:$0xf]
      %v592 = vld [vmem:[%s296 + $0x5c] sm:$0xf]
      %v593 = vld [vmem:[%s296 + $0x60] sm:$0xf]
      %v594 = vld [vmem:[%s296 + $0x64] sm:$0xf]
      %v595 = vld [vmem:[%s296 + $0x68] sm:$0xf]
      %v596 = vld [vmem:[%s296 + $0x6c] sm:$0xf]
      %v597 = vld [vmem:[%s296 + $0x70] sm:$0xf]
      %v598 = vld [vmem:[%s296 + $0x74] sm:$0xf]
      %v599 = vld [vmem:[%s296 + $0x78] sm:$0xf]
      %v600 = vld [vmem:[%s296 + $0x7c] sm:$0xf]
      %v601 = vunpack.c.l.bf16 %v569
      %v602 = vunpack.c.l.bf16 %v570
      %v603 = vunpack.c.l.bf16 %v571
      %v604 = vunpack.c.l.bf16 %v572
      %v605 = vunpack.c.l.bf16 %v573
      %v606 = vunpack.c.l.bf16 %v574
      %v607 = vunpack.c.l.bf16 %v575
      %v608 = vunpack.c.l.bf16 %v576
      %v609 = vunpack.c.l.bf16 %v577
      %v610 = vunpack.c.l.bf16 %v578
      %v611 = vunpack.c.l.bf16 %v579
      %v612 = vunpack.c.l.bf16 %v580
      %v613 = vunpack.c.l.bf16 %v581
      %v614 = vunpack.c.l.bf16 %v582
      %v615 = vunpack.c.l.bf16 %v583
      %v616 = vunpack.c.l.bf16 %v584
      %v617 = vunpack.c.l.bf16 %v585
      %v618 = vunpack.c.l.bf16 %v586
      %v619 = vunpack.c.l.bf16 %v587
      %v620 = vunpack.c.l.bf16 %v588
      %v621 = vunpack.c.l.bf16 %v589
      %v622 = vunpack.c.l.bf16 %v590
      %v623 = vunpack.c.l.bf16 %v591
      %v624 = vunpack.c.l.bf16 %v592
      %v625 = vunpack.c.l.bf16 %v593
      %v626 = vunpack.c.l.bf16 %v594
      %v627 = vunpack.c.l.bf16 %v595
      %v628 = vunpack.c.l.bf16 %v596
      %v629 = vunpack.c.l.bf16 %v597
      %v630 = vunpack.c.l.bf16 %v598
      %v631 = vunpack.c.l.bf16 %v599
      %v632 = vunpack.c.l.bf16 %v600
      %633 = vmatprep.subr.mxu0 0.0
      %634 = vmatpush1.msra.mxu0 %v475
      %635 = vmatprep.subr.mxu0 0.0
      %636 = vmatpush1.msra.mxu0 %v478
      %637 = vmatprep.subr.mxu0 0.0
      %638 = vmatpush1.msra.mxu0 %v483
      %639 = vmatprep.subr.mxu0 0.0
      %640 = vmatpush1.msra.mxu0 %v486
      %641 = vmatprep.subr.mxu0 0.0
      %642 = vmatpush1.msra.mxu0 %v491
      %643 = vmatprep.subr.mxu0 0.0
      %644 = vmatpush1.msra.mxu0 %v494
      %645 = vmatprep.subr.mxu0 0.0
      %646 = vmatpush1.msra.mxu0 %v499
      %647 = vmatprep.subr.mxu0 0.0
      %648 = vmatpush1.msra.mxu0 %v502
      %649 = vmatprep.subr.mxu0 0.0
      %650 = vmatpush1.msra.mxu0 %v507
      %651 = vmatprep.subr.mxu0 0.0
      %652 = vmatpush1.msra.mxu0 %v510
      %653 = vmatprep.subr.mxu0 0.0
      %654 = vmatpush1.msra.mxu0 %v515
      %655 = vmatprep.subr.mxu0 0.0
      %656 = vmatpush1.msra.mxu0 %v518
      %657 = vmatprep.subr.mxu0 0.0
      %658 = vmatpush1.msra.mxu0 %v523
      %659 = vmatprep.subr.mxu0 0.0
      %660 = vmatpush1.msra.mxu0 %v526
      %661 = vmatprep.subr.mxu0 0.0
      %662 = vmatpush1.msra.mxu0 %v531
      %663 = vmatprep.subr.mxu0 0.0
      %664 = vmatpush1.msra.mxu0 %v534
      %665 = vmatprep.subr.mxu0 0.0
      %666 = vmatpush1.msra.mxu0 0.0
      %667 = vmatprep.subr.mxu0 0.0
      %668 = vmatpush1.msra.mxu0 0.0
      %669 = vmatprep.subr.mxu0 0.0
      %670 = vmatpush1.msra.mxu0 0.0
      %671 = vmatprep.subr.mxu0 0.0
      %672 = vmatpush1.msra.mxu0 0.0
      %673 = vmatprep.subr.mxu0 0.0
      %674 = vmatpush1.msra.mxu0 0.0
      %675 = vmatprep.subr.mxu0 0.0
      %676 = vmatpush1.msra.mxu0 0.0
      %677 = vmatprep.subr.mxu0 0.0
      %678 = vmatpush1.msra.mxu0 0.0
      %679 = vmatprep.subr.mxu0 0.0
      %680 = vmatpush1.msra.mxu0 0.0
      %681 = vmatprep.subr.mxu0 0.0
      %682 = vmatpush1.msra.mxu0 0.0
      %683 = vmatprep.subr.mxu0 0.0
      %684 = vmatpush1.msra.mxu0 0.0
      %685 = vmatprep.subr.mxu0 0.0
      %686 = vmatpush1.msra.mxu0 0.0
      %687 = vmatprep.subr.mxu0 0.0
      %688 = vmatpush1.msra.mxu0 0.0
      %689 = vmatprep.subr.mxu0 0.0
      %690 = vmatpush1.msra.mxu0 0.0
      %691 = vmatprep.subr.mxu0 0.0
      %692 = vmatpush1.msra.mxu0 0.0
      %693 = vmatprep.subr.mxu0 0.0
      %694 = vmatpush1.msra.mxu0 0.0
      %695 = vmatprep.subr.mxu0 0.0
      %696 = vmatpush1.msra.mxu0 0.0
      %697 = vmatprep.mubr.f32.mxu0 0.0
      %698 = vmatmul.mubr.f32.gmra.mrb[0].mxu0 %v537
      %v699 = vpop.f32.mrb[0].mxu0
      %v700 = vadd.f32 %v601, %v699
      %v701 = vpop.f32.mrb[0].mxu0
      %702 = vmatprep.mubr.f32.mxu0 0.0
      %703 = vmatmul.mubr.f32.gmra.mrb[0].mxu0 %v538
      %v704 = vpop.f32.mrb[0].mxu0
      %v705 = vadd.f32 %v602, %v704
      %v706 = vpop.f32.mrb[0].mxu0
      %707 = vmatprep.mubr.f32.mxu0 0.0
      %708 = vmatmul.mubr.f32.gmra.mrb[0].mxu0 %v539
      %v709 = vpop.f32.mrb[0].mxu0
      %v710 = vadd.f32 %v603, %v709
      %v711 = vpop.f32.mrb[0].mxu0
      %712 = vmatprep.mubr.f32.mxu0 0.0
      %713 = vmatmul.mubr.f32.gmra.mrb[0].mxu0 %v540
      %v714 = vpop.f32.mrb[0].mxu0
      %v715 = vadd.f32 %v604, %v714
      %v716 = vpop.f32.mrb[0].mxu0
      %717 = vmatprep.mubr.f32.mxu0 0.0
      %718 = vmatmul.mubr.f32.gmra.mrb[0].mxu0 %v541
      %v719 = vpop.f32.mrb[0].mxu0
      %v720 = vadd.f32 %v605, %v719
      %v721 = vpop.f32.mrb[0].mxu0
      %722 = vmatprep.mubr.f32.mxu0 0.0
      %723 = vmatmul.mubr.f32.gmra.mrb[0].mxu0 %v542
      %v724 = vpop.f32.mrb[0].mxu0
      %v725 = vadd.f32 %v606, %v724
      %v726 = vpop.f32.mrb[0].mxu0
      %727 = vmatprep.mubr.f32.mxu0 0.0
      %728 = vmatmul.mubr.f32.gmra.mrb[0].mxu0 %v543
      %v729 = vpop.f32.mrb[0].mxu0
      %v730 = vadd.f32 %v607, %v729
      %v731 = vpop.f32.mrb[0].mxu0
      %732 = vmatprep.mubr.f32.mxu0 0.0
      %733 = vmatmul.mubr.f32.gmra.mrb[0].mxu0 %v544
      %v734 = vpop.f32.mrb[0].mxu0
      %v735 = vadd.f32 %v608, %v734
      %v736 = vpop.f32.mrb[0].mxu0
      %737 = vmatprep.mubr.f32.mxu0 0.0
      %738 = vmatmul.mubr.f32.gmra.mrb[0].mxu0 %v545
      %v739 = vpop.f32.mrb[0].mxu0
      %v740 = vadd.f32 %v609, %v739
      %v741 = vpop.f32.mrb[0].mxu0
      %742 = vmatprep.mubr.f32.mxu0 0.0
      %743 = vmatmul.mubr.f32.gmra.mrb[0].mxu0 %v546
      %v744 = vpop.f32.mrb[0].mxu0
      %v745 = vadd.f32 %v610, %v744
      %v746 = vpop.f32.mrb[0].mxu0
      %747 = vmatprep.mubr.f32.mxu0 0.0
      %748 = vmatmul.mubr.f32.gmra.mrb[0].mxu0 %v547
      %v749 = vpop.f32.mrb[0].mxu0
      %v750 = vadd.f32 %v611, %v749
      %v751 = vpop.f32.mrb[0].mxu0
      %752 = vmatprep.mubr.f32.mxu0 0.0
      %753 = vmatmul.mubr.f32.gmra.mrb[0].mxu0 %v548
      %v754 = vpop.f32.mrb[0].mxu0
      %v755 = vadd.f32 %v612, %v754
      %v756 = vpop.f32.mrb[0].mxu0
      %757 = vmatprep.mubr.f32.mxu0 0.0
      %758 = vmatmul.mubr.f32.gmra.mrb[0].mxu0 %v549
      %v759 = vpop.f32.mrb[0].mxu0
      %v760 = vadd.f32 %v613, %v759
      %v761 = vpop.f32.mrb[0].mxu0
      %762 = vmatprep.mubr.f32.mxu0 0.0
      %763 = vmatmul.mubr.f32.gmra.mrb[0].mxu0 %v550
      %v764 = vpop.f32.mrb[0].mxu0
      %v765 = vadd.f32 %v614, %v764
      %v766 = vpop.f32.mrb[0].mxu0
      %767 = vmatprep.mubr.f32.mxu0 0.0
      %768 = vmatmul.mubr.f32.gmra.mrb[0].mxu0 %v551
      %v769 = vpop.f32.mrb[0].mxu0
      %v770 = vadd.f32 %v615, %v769
      %v771 = vpop.f32.mrb[0].mxu0
      %772 = vmatprep.mubr.f32.mxu0 0.0
      %773 = vmatmul.mubr.f32.gmra.mrb[0].mxu0 %v552
      %v774 = vpop.f32.mrb[0].mxu0
      %v775 = vadd.f32 %v616, %v774
      %v776 = vpop.f32.mrb[0].mxu0
      %777 = vmatprep.mubr.f32.mxu0 0.0
      %778 = vmatmul.mubr.f32.gmra.mrb[0].mxu0 %v553
      %v779 = vpop.f32.mrb[0].mxu0
      %v780 = vadd.f32 %v617, %v779
      %v781 = vpop.f32.mrb[0].mxu0
      %782 = vmatprep.mubr.f32.mxu0 0.0
      %783 = vmatmul.mubr.f32.gmra.mrb[0].mxu0 %v554
      %v784 = vpop.f32.mrb[0].mxu0
      %v785 = vadd.f32 %v618, %v784
      %v786 = vpop.f32.mrb[0].mxu0
      %787 = vmatprep.mubr.f32.mxu0 0.0
      %788 = vmatmul.mubr.f32.gmra.mrb[0].mxu0 %v555
      %v789 = vpop.f32.mrb[0].mxu0
      %v790 = vadd.f32 %v619, %v789
      %v791 = vpop.f32.mrb[0].mxu0
      %792 = vmatprep.mubr.f32.mxu0 0.0
      %793 = vmatmul.mubr.f32.gmra.mrb[0].mxu0 %v556
      %v794 = vpop.f32.mrb[0].mxu0
      %v795 = vadd.f32 %v620, %v794
      %v796 = vpop.f32.mrb[0].mxu0
      %797 = vmatprep.mubr.f32.mxu0 0.0
      %798 = vmatmul.mubr.f32.gmra.mrb[0].mxu0 %v557
      %v799 = vpop.f32.mrb[0].mxu0
      %v800 = vadd.f32 %v621, %v799
      %v801 = vpop.f32.mrb[0].mxu0
      %802 = vmatprep.mubr.f32.mxu0 0.0
      %803 = vmatmul.mubr.f32.gmra.mrb[0].mxu0 %v558
      %v804 = vpop.f32.mrb[0].mxu0
      %v805 = vadd.f32 %v622, %v804
      %v806 = vpop.f32.mrb[0].mxu0
      %807 = vmatprep.mubr.f32.mxu0 0.0
      %808 = vmatmul.mubr.f32.gmra.mrb[0].mxu0 %v559
      %v809 = vpop.f32.mrb[0].mxu0
      %v810 = vadd.f32 %v623, %v809
      %v811 = vpop.f32.mrb[0].mxu0
      %812 = vmatprep.mubr.f32.mxu0 0.0
      %813 = vmatmul.mubr.f32.gmra.mrb[0].mxu0 %v560
      %v814 = vpop.f32.mrb[0].mxu0
      %v815 = vadd.f32 %v624, %v814
      %v816 = vpop.f32.mrb[0].mxu0
      %817 = vmatprep.mubr.f32.mxu0 0.0
      %818 = vmatmul.mubr.f32.gmra.mrb[0].mxu0 %v561
      %v819 = vpop.f32.mrb[0].mxu0
      %v820 = vadd.f32 %v625, %v819
      %v821 = vpop.f32.mrb[0].mxu0
      %822 = vmatprep.mubr.f32.mxu0 0.0
      %823 = vmatmul.mubr.f32.gmra.mrb[0].mxu0 %v562
      %v824 = vpop.f32.mrb[0].mxu0
      %v825 = vadd.f32 %v626, %v824
      %v826 = vpop.f32.mrb[0].mxu0
      %827 = vmatprep.mubr.f32.mxu0 0.0
      %828 = vmatmul.mubr.f32.gmra.mrb[0].mxu0 %v563
      %v829 = vpop.f32.mrb[0].mxu0
      %v830 = vadd.f32 %v627, %v829
      %v831 = vpop.f32.mrb[0].mxu0
      %832 = vmatprep.mubr.f32.mxu0 0.0
      %833 = vmatmul.mubr.f32.gmra.mrb[0].mxu0 %v564
      %v834 = vpop.f32.mrb[0].mxu0
      %v835 = vadd.f32 %v628, %v834
      %v836 = vpop.f32.mrb[0].mxu0
      %837 = vmatprep.mubr.f32.mxu0 0.0
      %838 = vmatmul.mubr.f32.gmra.mrb[0].mxu0 %v565
      %v839 = vpop.f32.mrb[0].mxu0
      %v840 = vadd.f32 %v629, %v839
      %v841 = vpop.f32.mrb[0].mxu0
      %842 = vmatprep.mubr.f32.mxu0 0.0
      %843 = vmatmul.mubr.f32.gmra.mrb[0].mxu0 %v566
      %v844 = vpop.f32.mrb[0].mxu0
      %v845 = vadd.f32 %v630, %v844
      %v846 = vpop.f32.mrb[0].mxu0
      %847 = vmatprep.mubr.f32.mxu0 0.0
      %848 = vmatmul.mubr.f32.gmra.mrb[0].mxu0 %v567
      %v849 = vpop.f32.mrb[0].mxu0
      %v850 = vadd.f32 %v631, %v849
      %v851 = vpop.f32.mrb[0].mxu0
      %852 = vmatprep.mubr.f32.mxu0 0.0
      %853 = vmatmul.mubr.f32.gmra.mrb[0].mxu0 %v568
      %v854 = vpop.f32.mrb[0].mxu0
      %v855 = vadd.f32 %v632, %v854
      %v856 = vpop.f32.mrb[0].mxu0
      %857 = vdwg.mxu0
      %v858 = vmax.f32 %v700, 0.0
      %v859 = vmax.f32 %v705, 0.0
      %v860 = vmax.f32 %v710, 0.0
      %v861 = vmax.f32 %v715, 0.0
      %v862 = vmax.f32 %v720, 0.0
      %v863 = vmax.f32 %v725, 0.0
      %v864 = vmax.f32 %v730, 0.0
      %v865 = vmax.f32 %v735, 0.0
      %v866 = vmax.f32 %v740, 0.0
      %v867 = vmax.f32 %v745, 0.0
      %v868 = vmax.f32 %v750, 0.0
      %v869 = vmax.f32 %v755, 0.0
      %v870 = vmax.f32 %v760, 0.0
      %v871 = vmax.f32 %v765, 0.0
      %v872 = vmax.f32 %v770, 0.0
      %v873 = vmax.f32 %v775, 0.0
      %v874 = vmax.f32 %v780, 0.0
      %v875 = vmax.f32 %v785, 0.0
      %v876 = vmax.f32 %v790, 0.0
      %v877 = vmax.f32 %v795, 0.0
      %v878 = vmax.f32 %v800, 0.0
      %v879 = vmax.f32 %v805, 0.0
      %v880 = vmax.f32 %v810, 0.0
      %v881 = vmax.f32 %v815, 0.0
      %v882 = vmax.f32 %v820, 0.0
      %v883 = vmax.f32 %v825, 0.0
      %v884 = vmax.f32 %v830, 0.0
      %v885 = vmax.f32 %v835, 0.0
      %v886 = vmax.f32 %v840, 0.0
      %v887 = vmax.f32 %v845, 0.0
      %v888 = vmax.f32 %v850, 0.0
      %v889 = vmax.f32 %v855, 0.0
      %v890 = vxor.u32 %v858, 2147483648
      %v891 = vxor.u32 %v859, 2147483648
      %v892 = vxor.u32 %v860, 2147483648
      %v893 = vxor.u32 %v861, 2147483648
      %v894 = vxor.u32 %v862, 2147483648
      %v895 = vxor.u32 %v863, 2147483648
      %v896 = vxor.u32 %v864, 2147483648
      %v897 = vxor.u32 %v865, 2147483648
      %v898 = vxor.u32 %v866, 2147483648
      %v899 = vxor.u32 %v867, 2147483648
      %v900 = vxor.u32 %v868, 2147483648
      %v901 = vxor.u32 %v869, 2147483648
      %v902 = vxor.u32 %v870, 2147483648
      %v903 = vxor.u32 %v871, 2147483648
      %v904 = vxor.u32 %v872, 2147483648
      %v905 = vxor.u32 %v873, 2147483648
      %v906 = vxor.u32 %v874, 2147483648
      %v907 = vxor.u32 %v875, 2147483648
      %v908 = vxor.u32 %v876, 2147483648
      %v909 = vxor.u32 %v877, 2147483648
      %v910 = vxor.u32 %v878, 2147483648
      %v911 = vxor.u32 %v879, 2147483648
      %v912 = vxor.u32 %v880, 2147483648
      %v913 = vxor.u32 %v881, 2147483648
      %v914 = vxor.u32 %v882, 2147483648
      %v915 = vxor.u32 %v883, 2147483648
      %v916 = vxor.u32 %v884, 2147483648
      %v917 = vxor.u32 %v885, 2147483648
      %v918 = vxor.u32 %v886, 2147483648
      %v919 = vxor.u32 %v887, 2147483648
      %v920 = vxor.u32 %v888, 2147483648
      %v921 = vxor.u32 %v889, 2147483648
      %v922 = vmul.f32 %v890, 1.442695
      %v923 = vpow.pop %v922
      %v924 = vmul.f32 %v891, 1.442695
      %v925 = vpow.pop %v924
      %v926 = vmul.f32 %v892, 1.442695
      %v927 = vpow.pop %v926
      %v928 = vmul.f32 %v893, 1.442695
      %v929 = vpow.pop %v928
      %v930 = vmul.f32 %v894, 1.442695
      %v931 = vpow.pop %v930
      %v932 = vmul.f32 %v895, 1.442695
      %v933 = vpow.pop %v932
      %v934 = vmul.f32 %v896, 1.442695
      %v935 = vpow.pop %v934
      %v936 = vmul.f32 %v897, 1.442695
      %v937 = vpow.pop %v936
      %v938 = vmul.f32 %v898, 1.442695
      %v939 = vpow.pop %v938
      %v940 = vmul.f32 %v899, 1.442695
      %v941 = vpow.pop %v940
      %v942 = vmul.f32 %v900, 1.442695
      %v943 = vpow.pop %v942
      %v944 = vmul.f32 %v901, 1.442695
      %v945 = vpow.pop %v944
      %v946 = vmul.f32 %v902, 1.442695
      %v947 = vpow.pop %v946
      %v948 = vmul.f32 %v903, 1.442695
      %v949 = vpow.pop %v948
      %v950 = vmul.f32 %v904, 1.442695
      %v951 = vpow.pop %v950
      %v952 = vmul.f32 %v905, 1.442695
      %v953 = vpow.pop %v952
      %v954 = vmul.f32 %v906, 1.442695
      %v955 = vpow.pop %v954
      %v956 = vmul.f32 %v907, 1.442695
      %v957 = vpow.pop %v956
      %v958 = vmul.f32 %v908, 1.442695
      %v959 = vpow.pop %v958
      %v960 = vmul.f32 %v909, 1.442695
      %v961 = vpow.pop %v960
      %v962 = vmul.f32 %v910, 1.442695
      %v963 = vpow.pop %v962
      %v964 = vmul.f32 %v911, 1.442695
      %v965 = vpow.pop %v964
      %v966 = vmul.f32 %v912, 1.442695
      %v967 = vpow.pop %v966
      %v968 = vmul.f32 %v913, 1.442695
      %v969 = vpow.pop %v968
      %v970 = vmul.f32 %v914, 1.442695
      %v971 = vpow.pop %v970
      %v972 = vmul.f32 %v915, 1.442695
      %v973 = vpow.pop %v972
      %v974 = vmul.f32 %v916, 1.442695
      %v975 = vpow.pop %v974
      %v976 = vmul.f32 %v917, 1.442695
      %v977 = vpow.pop %v976
      %v978 = vmul.f32 %v918, 1.442695
      %v979 = vpow.pop %v978
      %v980 = vmul.f32 %v919, 1.442695
      %v981 = vpow.pop %v980
      %v982 = vmul.f32 %v920, 1.442695
      %v983 = vpow.pop %v982
      %v984 = vmul.f32 %v921, 1.442695
      %v985 = vpow.pop %v984
      %v986 = vadd.f32 %v923, 1.0
      %v987 = vadd.f32 %v925, 1.0
      %v988 = vadd.f32 %v927, 1.0
      %v989 = vadd.f32 %v929, 1.0
      %v990 = vadd.f32 %v931, 1.0
      %v991 = vadd.f32 %v933, 1.0
      %v992 = vadd.f32 %v935, 1.0
      %v993 = vadd.f32 %v937, 1.0
      %v994 = vadd.f32 %v939, 1.0
      %v995 = vadd.f32 %v941, 1.0
      %v996 = vadd.f32 %v943, 1.0
      %v997 = vadd.f32 %v945, 1.0
      %v998 = vadd.f32 %v947, 1.0
      %v999 = vadd.f32 %v949, 1.0
      %v1000 = vadd.f32 %v951, 1.0
      %v1001 = vadd.f32 %v953, 1.0
      %v1002 = vadd.f32 %v955, 1.0
      %v1003 = vadd.f32 %v957, 1.0
      %v1004 = vadd.f32 %v959, 1.0
      %v1005 = vadd.f32 %v961, 1.0
      %v1006 = vadd.f32 %v963, 1.0
      %v1007 = vadd.f32 %v965, 1.0
      %v1008 = vadd.f32 %v967, 1.0
      %v1009 = vadd.f32 %v969, 1.0
      %v1010 = vadd.f32 %v971, 1.0
      %v1011 = vadd.f32 %v973, 1.0
      %v1012 = vadd.f32 %v975, 1.0
      %v1013 = vadd.f32 %v977, 1.0
      %v1014 = vadd.f32 %v979, 1.0
      %v1015 = vadd.f32 %v981, 1.0
      %v1016 = vadd.f32 %v983, 1.0
      %v1017 = vadd.f32 %v985, 1.0
      %v1018 = vrcp.pop %v986
      %v1019 = vmul.f32 1.0, %v1018
      %v1020 = vrcp.pop %v987
      %v1021 = vmul.f32 1.0, %v1020
      %v1022 = vrcp.pop %v988
      %v1023 = vmul.f32 1.0, %v1022
      %v1024 = vrcp.pop %v989
      %v1025 = vmul.f32 1.0, %v1024
      %v1026 = vrcp.pop %v990
      %v1027 = vmul.f32 1.0, %v1026
      %v1028 = vrcp.pop %v991
      %v1029 = vmul.f32 1.0, %v1028
      %v1030 = vrcp.pop %v992
      %v1031 = vmul.f32 1.0, %v1030
      %v1032 = vrcp.pop %v993
      %v1033 = vmul.f32 1.0, %v1032
      %v1034 = vrcp.pop %v994
      %v1035 = vmul.f32 1.0, %v1034
      %v1036 = vrcp.pop %v995
      %v1037 = vmul.f32 1.0, %v1036
      %v1038 = vrcp.pop %v996
      %v1039 = vmul.f32 1.0, %v1038
      %v1040 = vrcp.pop %v997
      %v1041 = vmul.f32 1.0, %v1040
      %v1042 = vrcp.pop %v998
      %v1043 = vmul.f32 1.0, %v1042
      %v1044 = vrcp.pop %v999
      %v1045 = vmul.f32 1.0, %v1044
      %v1046 = vrcp.pop %v1000
      %v1047 = vmul.f32 1.0, %v1046
      %v1048 = vrcp.pop %v1001
      %v1049 = vmul.f32 1.0, %v1048
      %v1050 = vrcp.pop %v1002
      %v1051 = vmul.f32 1.0, %v1050
      %v1052 = vrcp.pop %v1003
      %v1053 = vmul.f32 1.0, %v1052
      %v1054 = vrcp.pop %v1004
      %v1055 = vmul.f32 1.0, %v1054
      %v1056 = vrcp.pop %v1005
      %v1057 = vmul.f32 1.0, %v1056
      %v1058 = vrcp.pop %v1006
      %v1059 = vmul.f32 1.0, %v1058
      %v1060 = vrcp.pop %v1007
      %v1061 = vmul.f32 1.0, %v1060
      %v1062 = vrcp.pop %v1008
      %v1063 = vmul.f32 1.0, %v1062
      %v1064 = vrcp.pop %v1009
      %v1065 = vmul.f32 1.0, %v1064
      %v1066 = vrcp.pop %v1010
      %v1067 = vmul.f32 1.0, %v1066
      %v1068 = vrcp.pop %v1011
      %v1069 = vmul.f32 1.0, %v1068
      %v1070 = vrcp.pop %v1012
      %v1071 = vmul.f32 1.0, %v1070
      %v1072 = vrcp.pop %v1013
      %v1073 = vmul.f32 1.0, %v1072
      %v1074 = vrcp.pop %v1014
      %v1075 = vmul.f32 1.0, %v1074
      %v1076 = vrcp.pop %v1015
      %v1077 = vmul.f32 1.0, %v1076
      %v1078 = vrcp.pop %v1016
      %v1079 = vmul.f32 1.0, %v1078
      %v1080 = vrcp.pop %v1017
      %v1081 = vmul.f32 1.0, %v1080
      %v1082 = vmul.f32 %v1019, %v601
      %v1083 = vmul.f32 %v1021, %v602
      %v1084 = vmul.f32 %v1023, %v603
      %v1085 = vmul.f32 %v1025, %v604
      %v1086 = vmul.f32 %v1027, %v605
      %v1087 = vmul.f32 %v1029, %v606
      %v1088 = vmul.f32 %v1031, %v607
      %v1089 = vmul.f32 %v1033, %v608
      %v1090 = vmul.f32 %v1035, %v609
      %v1091 = vmul.f32 %v1037, %v610
      %v1092 = vmul.f32 %v1039, %v611
      %v1093 = vmul.f32 %v1041, %v612
      %v1094 = vmul.f32 %v1043, %v613
      %v1095 = vmul.f32 %v1045, %v614
      %v1096 = vmul.f32 %v1047, %v615
      %v1097 = vmul.f32 %v1049, %v616
      %v1098 = vmul.f32 %v1051, %v617
      %v1099 = vmul.f32 %v1053, %v618
      %v1100 = vmul.f32 %v1055, %v619
      %v1101 = vmul.f32 %v1057, %v620
      %v1102 = vmul.f32 %v1059, %v621
      %v1103 = vmul.f32 %v1061, %v622
      %v1104 = vmul.f32 %v1063, %v623
      %v1105 = vmul.f32 %v1065, %v624
      %v1106 = vmul.f32 %v1067, %v625
      %v1107 = vmul.f32 %v1069, %v626
      %v1108 = vmul.f32 %v1071, %v627
      %v1109 = vmul.f32 %v1073, %v628
      %v1110 = vmul.f32 %v1075, %v629
      %v1111 = vmul.f32 %v1077, %v630
      %v1112 = vmul.f32 %v1079, %v631
      %v1113 = vmul.f32 %v1081, %v632
      %v1114 = vpack.c.bf16 %v1083, %v1082
      %v1115 = vpack.c.bf16 %v1085, %v1084
      %v1116 = vpack.c.bf16 %v1087, %v1086
      %v1117 = vpack.c.bf16 %v1089, %v1088
      %v1118 = vpack.c.bf16 %v1091, %v1090
      %v1119 = vpack.c.bf16 %v1093, %v1092
      %v1120 = vpack.c.bf16 %v1095, %v1094
      %v1121 = vpack.c.bf16 %v1097, %v1096
      %v1122 = vpack.c.bf16 %v1099, %v1098
      %v1123 = vpack.c.bf16 %v1101, %v1100
      %v1124 = vpack.c.bf16 %v1103, %v1102
      %v1125 = vpack.c.bf16 %v1105, %v1104
      %v1126 = vpack.c.bf16 %v1107, %v1106
      %v1127 = vpack.c.bf16 %v1109, %v1108
      %v1128 = vpack.c.bf16 %v1111, %v1110
      %v1129 = vpack.c.bf16 %v1113, %v1112
      %v1130 = vld [vmem:[%s5] sm:$0xf]
      %v1131 = vld [vmem:[%s5 + $0x4] sm:$0xf]
      %v1132 = vld [vmem:[%s5 + $0x8] sm:$0xf]
      %v1133 = vld [vmem:[%s5 + $0xc] sm:$0xf]
      %v1134 = vld [vmem:[%s5 + $0x10] sm:$0xf]
      %v1135 = vld [vmem:[%s5 + $0x14] sm:$0xf]
      %v1136 = vld [vmem:[%s5 + $0x18] sm:$0xf]
      %v1137 = vld [vmem:[%s5 + $0x1c] sm:$0xf]
      %v1138 = vld [vmem:[%s5 + $0x20] sm:$0xf]
      %v1139 = vld [vmem:[%s5 + $0x24] sm:$0xf]
      %v1140 = vld [vmem:[%s5 + $0x28] sm:$0xf]
      %v1141 = vld [vmem:[%s5 + $0x2c] sm:$0xf]
      %v1142 = vld [vmem:[%s5 + $0x30] sm:$0xf]
      %v1143 = vld [vmem:[%s5 + $0x34] sm:$0xf]
      %v1144 = vld [vmem:[%s5 + $0x38] sm:$0xf]
      %v1145 = vld [vmem:[%s5 + $0x3c] sm:$0xf]
      %v1146 = vld [vmem:[%s6] sm:$0x1]
      %v1148 = vlaneseq
      %v1149 = vshrl.u32 %v1148, 7
      %v1150 = vsub.s32 0, %v1149
      %v1151 = vrot.slane %v1146, %v1150
      %v1169 = vunpack.c.l.b16 %v1130
      %v1170 = vunpack.c.l.b16 %v1131
      %v1171 = vunpack.c.l.b16 %v1132
      %v1172 = vunpack.c.l.b16 %v1133
      %v1173 = vunpack.c.l.b16 %v1134
      %v1174 = vunpack.c.l.b16 %v1135
      %v1175 = vunpack.c.l.b16 %v1136
      %v1176 = vunpack.c.l.b16 %v1137
      %v1177 = vunpack.c.l.b16 %v1138
      %v1178 = vunpack.c.l.b16 %v1139
      %v1179 = vunpack.c.l.b16 %v1140
      %v1180 = vunpack.c.l.b16 %v1141
      %v1181 = vunpack.c.l.b16 %v1142
      %v1182 = vunpack.c.l.b16 %v1143
      %v1183 = vunpack.c.l.b16 %v1144
      %v1184 = vunpack.c.l.b16 %v1145
      %v1185 = vpack.c.b16 %v1170, %v1169
      %v1186 = vpack.c.b16 %v1172, %v1171
      %v1187 = vpack.c.b16 %v1174, %v1173
      %v1188 = vpack.c.b16 %v1176, %v1175
      %v1189 = vpack.c.b16 %v1178, %v1177
      %v1190 = vpack.c.b16 %v1180, %v1179
      %v1191 = vpack.c.b16 %v1182, %v1181
      %v1192 = vpack.c.b16 %v1184, %v1183
      %1201 = vmatprep.subr.bf16.mxu0 0
      %1202 = vmatpush1.bf16.msra.mxu0 %v1185
      %1203 = vmatprep.subr.bf16.mxu0 0
      %1204 = vmatpush1.bf16.msra.mxu0 %v1186
      %1205 = vmatprep.subr.bf16.mxu0 0
      %1206 = vmatpush1.bf16.msra.mxu0 %v1187
      %1207 = vmatprep.subr.bf16.mxu0 0
      %1208 = vmatpush1.bf16.msra.mxu0 %v1188
      %1209 = vmatprep.subr.bf16.mxu0 0
      %1210 = vmatpush1.bf16.msra.mxu0 %v1189
      %1211 = vmatprep.subr.bf16.mxu0 0
      %1212 = vmatpush1.bf16.msra.mxu0 %v1190
      %1213 = vmatprep.subr.bf16.mxu0 0
      %1214 = vmatpush1.bf16.msra.mxu0 %v1191
      %1215 = vmatprep.subr.bf16.mxu0 0
      %1216 = vmatpush1.bf16.msra.mxu0 %v1192
      %1217 = vmatprep.subr.bf16.mxu0 0
      %1218 = vmatpush1.bf16.msra.mxu0 0
      %1219 = vmatprep.subr.bf16.mxu0 0
      %1220 = vmatpush1.bf16.msra.mxu0 0
      %1221 = vmatprep.subr.bf16.mxu0 0
      %1222 = vmatpush1.bf16.msra.mxu0 0
      %1223 = vmatprep.subr.bf16.mxu0 0
      %1224 = vmatpush1.bf16.msra.mxu0 0
      %1225 = vmatprep.subr.bf16.mxu0 0
      %1226 = vmatpush1.bf16.msra.mxu0 0
      %1227 = vmatprep.subr.bf16.mxu0 0
      %1228 = vmatpush1.bf16.msra.mxu0 0
      %1229 = vmatprep.subr.bf16.mxu0 0
      %1230 = vmatpush1.bf16.msra.mxu0 0
      %1231 = vmatprep.subr.bf16.mxu0 0
      %1232 = vmatpush1.bf16.msra.mxu0 0
      %1233 = vmatprep.mubr.bf16.mxu0 0
      %1234 = vmatmul.mubr.bf16.gmra.mrb[0].mxu0 %v1114
      %v1235 = vpop.f32.mrb[0].mxu0
      %v1236 = vadd.f32 %v1151, %v1235
      %v1237 = vpop.f32.mrb[0].mxu0
      %v1238 = vpop.f32.mrb[0].mxu0
      %v1239 = vadd.f32 %v1151, %v1238
      %v1240 = vpop.f32.mrb[0].mxu0
      %1241 = vmatprep.mubr.bf16.mxu0 0
      %1242 = vmatmul.mubr.bf16.gmra.mrb[0].mxu0 %v1115
      %v1243 = vpop.f32.mrb[0].mxu0
      %v1244 = vadd.f32 %v1151, %v1243
      %v1245 = vpop.f32.mrb[0].mxu0
      %v1246 = vpop.f32.mrb[0].mxu0
      %v1247 = vadd.f32 %v1151, %v1246
      %v1248 = vpop.f32.mrb[0].mxu0
      %1249 = vmatprep.mubr.bf16.mxu0 0
      %1250 = vmatmul.mubr.bf16.gmra.mrb[0].mxu0 %v1116
      %v1251 = vpop.f32.mrb[0].mxu0
      %v1252 = vadd.f32 %v1151, %v1251
      %v1253 = vpop.f32.mrb[0].mxu0
      %v1254 = vpop.f32.mrb[0].mxu0
      %v1255 = vadd.f32 %v1151, %v1254
      %v1256 = vpop.f32.mrb[0].mxu0
      %1257 = vmatprep.mubr.bf16.mxu0 0
      %1258 = vmatmul.mubr.bf16.gmra.mrb[0].mxu0 %v1117
      %v1259 = vpop.f32.mrb[0].mxu0
      %v1260 = vadd.f32 %v1151, %v1259
      %v1261 = vpop.f32.mrb[0].mxu0
      %v1262 = vpop.f32.mrb[0].mxu0
      %v1263 = vadd.f32 %v1151, %v1262
      %v1264 = vpop.f32.mrb[0].mxu0
      %1265 = vmatprep.mubr.bf16.mxu0 0
      %1266 = vmatmul.mubr.bf16.gmra.mrb[0].mxu0 %v1118
      %v1267 = vpop.f32.mrb[0].mxu0
      %v1268 = vadd.f32 %v1151, %v1267
      %v1269 = vpop.f32.mrb[0].mxu0
      %v1270 = vpop.f32.mrb[0].mxu0
      %v1271 = vadd.f32 %v1151, %v1270
      %v1272 = vpop.f32.mrb[0].mxu0
      %1273 = vmatprep.mubr.bf16.mxu0 0
      %1274 = vmatmul.mubr.bf16.gmra.mrb[0].mxu0 %v1119
      %v1275 = vpop.f32.mrb[0].mxu0
      %v1276 = vadd.f32 %v1151, %v1275
      %v1277 = vpop.f32.mrb[0].mxu0
      %v1278 = vpop.f32.mrb[0].mxu0
      %v1279 = vadd.f32 %v1151, %v1278
      %v1280 = vpop.f32.mrb[0].mxu0
      %1281 = vmatprep.mubr.bf16.mxu0 0
      %1282 = vmatmul.mubr.bf16.gmra.mrb[0].mxu0 %v1120
      %v1283 = vpop.f32.mrb[0].mxu0
      %v1284 = vadd.f32 %v1151, %v1283
      %v1285 = vpop.f32.mrb[0].mxu0
      %v1286 = vpop.f32.mrb[0].mxu0
      %v1287 = vadd.f32 %v1151, %v1286
      %v1288 = vpop.f32.mrb[0].mxu0
      %1289 = vmatprep.mubr.bf16.mxu0 0
      %1290 = vmatmul.mubr.bf16.gmra.mrb[0].mxu0 %v1121
      %v1291 = vpop.f32.mrb[0].mxu0
      %v1292 = vadd.f32 %v1151, %v1291
      %v1293 = vpop.f32.mrb[0].mxu0
      %v1294 = vpop.f32.mrb[0].mxu0
      %v1295 = vadd.f32 %v1151, %v1294
      %v1296 = vpop.f32.mrb[0].mxu0
      %1297 = vmatprep.mubr.bf16.mxu0 0
      %1298 = vmatmul.mubr.bf16.gmra.mrb[0].mxu0 %v1122
      %v1299 = vpop.f32.mrb[0].mxu0
      %v1300 = vadd.f32 %v1151, %v1299
      %v1301 = vpop.f32.mrb[0].mxu0
      %v1302 = vpop.f32.mrb[0].mxu0
      %v1303 = vadd.f32 %v1151, %v1302
      %v1304 = vpop.f32.mrb[0].mxu0
      %1305 = vmatprep.mubr.bf16.mxu0 0
      %1306 = vmatmul.mubr.bf16.gmra.mrb[0].mxu0 %v1123
      %v1307 = vpop.f32.mrb[0].mxu0
      %v1308 = vadd.f32 %v1151, %v1307
      %v1309 = vpop.f32.mrb[0].mxu0
      %v1310 = vpop.f32.mrb[0].mxu0
      %v1311 = vadd.f32 %v1151, %v1310
      %v1312 = vpop.f32.mrb[0].mxu0
      %1313 = vmatprep.mubr.bf16.mxu0 0
      %1314 = vmatmul.mubr.bf16.gmra.mrb[0].mxu0 %v1124
      %v1315 = vpop.f32.mrb[0].mxu0
      %v1316 = vadd.f32 %v1151, %v1315
      %v1317 = vpop.f32.mrb[0].mxu0
      %v1318 = vpop.f32.mrb[0].mxu0
      %v1319 = vadd.f32 %v1151, %v1318
      %v1320 = vpop.f32.mrb[0].mxu0
      %1321 = vmatprep.mubr.bf16.mxu0 0
      %1322 = vmatmul.mubr.bf16.gmra.mrb[0].mxu0 %v1125
      %v1323 = vpop.f32.mrb[0].mxu0
      %v1324 = vadd.f32 %v1151, %v1323
      %v1325 = vpop.f32.mrb[0].mxu0
      %v1326 = vpop.f32.mrb[0].mxu0
      %v1327 = vadd.f32 %v1151, %v1326
      %v1328 = vpop.f32.mrb[0].mxu0
      %1329 = vmatprep.mubr.bf16.mxu0 0
      %1330 = vmatmul.mubr.bf16.gmra.mrb[0].mxu0 %v1126
      %v1331 = vpop.f32.mrb[0].mxu0
      %v1332 = vadd.f32 %v1151, %v1331
      %v1333 = vpop.f32.mrb[0].mxu0
      %v1334 = vpop.f32.mrb[0].mxu0
      %v1335 = vadd.f32 %v1151, %v1334
      %v1336 = vpop.f32.mrb[0].mxu0
      %1337 = vmatprep.mubr.bf16.mxu0 0
      %1338 = vmatmul.mubr.bf16.gmra.mrb[0].mxu0 %v1127
      %v1339 = vpop.f32.mrb[0].mxu0
      %v1340 = vadd.f32 %v1151, %v1339
      %v1341 = vpop.f32.mrb[0].mxu0
      %v1342 = vpop.f32.mrb[0].mxu0
      %v1343 = vadd.f32 %v1151, %v1342
      %v1344 = vpop.f32.mrb[0].mxu0
      %1345 = vmatprep.mubr.bf16.mxu0 0
      %1346 = vmatmul.mubr.bf16.gmra.mrb[0].mxu0 %v1128
      %v1347 = vpop.f32.mrb[0].mxu0
      %v1348 = vadd.f32 %v1151, %v1347
      %v1349 = vpop.f32.mrb[0].mxu0
      %v1350 = vpop.f32.mrb[0].mxu0
      %v1351 = vadd.f32 %v1151, %v1350
      %v1352 = vpop.f32.mrb[0].mxu0
      %1353 = vmatprep.mubr.bf16.mxu0 0
      %1354 = vmatmul.mubr.bf16.gmra.mrb[0].mxu0 %v1129
      %v1355 = vpop.f32.mrb[0].mxu0
      %v1356 = vadd.f32 %v1151, %v1355
      %v1357 = vpop.f32.mrb[0].mxu0
      %v1358 = vpop.f32.mrb[0].mxu0
      %v1359 = vadd.f32 %v1151, %v1358
      %v1360 = vpop.f32.mrb[0].mxu0
      %1361 = vdwg.mxu0
      %v1362 = vmax.f32 %v1236, 0.0
      %v1363 = vmax.f32 %v1239, 0.0
      %v1364 = vmax.f32 %v1244, 0.0
      %v1365 = vmax.f32 %v1247, 0.0
      %v1366 = vmax.f32 %v1252, 0.0
      %v1367 = vmax.f32 %v1255, 0.0
      %v1368 = vmax.f32 %v1260, 0.0
      %v1369 = vmax.f32 %v1263, 0.0
      %v1370 = vmax.f32 %v1268, 0.0
      %v1371 = vmax.f32 %v1271, 0.0
      %v1372 = vmax.f32 %v1276, 0.0
      %v1373 = vmax.f32 %v1279, 0.0
      %v1374 = vmax.f32 %v1284, 0.0
      %v1375 = vmax.f32 %v1287, 0.0
      %v1376 = vmax.f32 %v1292, 0.0
      %v1377 = vmax.f32 %v1295, 0.0
      %v1378 = vmax.f32 %v1300, 0.0
      %v1379 = vmax.f32 %v1303, 0.0
      %v1380 = vmax.f32 %v1308, 0.0
      %v1381 = vmax.f32 %v1311, 0.0
      %v1382 = vmax.f32 %v1316, 0.0
      %v1383 = vmax.f32 %v1319, 0.0
      %v1384 = vmax.f32 %v1324, 0.0
      %v1385 = vmax.f32 %v1327, 0.0
      %v1386 = vmax.f32 %v1332, 0.0
      %v1387 = vmax.f32 %v1335, 0.0
      %v1388 = vmax.f32 %v1340, 0.0
      %v1389 = vmax.f32 %v1343, 0.0
      %v1390 = vmax.f32 %v1348, 0.0
      %v1391 = vmax.f32 %v1351, 0.0
      %v1392 = vmax.f32 %v1356, 0.0
      %v1393 = vmax.f32 %v1359, 0.0
      %1394 = vst [vmem:[%s302] sm:$0xff] %v1362
      %1395 = vst [vmem:[%s302 + $0x8] sm:$0xff] %v1363
      %1396 = vst [vmem:[%s302 + $0x10] sm:$0xff] %v1364
      %1397 = vst [vmem:[%s302 + $0x18] sm:$0xff] %v1365
      %1398 = vst [vmem:[%s302 + $0x20] sm:$0xff] %v1366
      %1399 = vst [vmem:[%s302 + $0x28] sm:$0xff] %v1367
      %1400 = vst [vmem:[%s302 + $0x30] sm:$0xff] %v1368
      %1401 = vst [vmem:[%s302 + $0x38] sm:$0xff] %v1369
      %1402 = vst [vmem:[%s302 + $0x40] sm:$0xff] %v1370
      %1403 = vst [vmem:[%s302 + $0x48] sm:$0xff] %v1371
      %1404 = vst [vmem:[%s302 + $0x50] sm:$0xff] %v1372
      %1405 = vst [vmem:[%s302 + $0x58] sm:$0xff] %v1373
      %1406 = vst [vmem:[%s302 + $0x60] sm:$0xff] %v1374
      %1407 = vst [vmem:[%s302 + $0x68] sm:$0xff] %v1375
      %1408 = vst [vmem:[%s302 + $0x70] sm:$0xff] %v1376
      %1409 = vst [vmem:[%s302 + $0x78] sm:$0xff] %v1377
      %1410 = vst [vmem:[%s302 + $0x80] sm:$0xff] %v1378
      %1411 = vst [vmem:[%s302 + $0x88] sm:$0xff] %v1379
      %1412 = vst [vmem:[%s302 + $0x90] sm:$0xff] %v1380
      %1413 = vst [vmem:[%s302 + $0x98] sm:$0xff] %v1381
      %1414 = vst [vmem:[%s302 + $0xa0] sm:$0xff] %v1382
      %1415 = vst [vmem:[%s302 + $0xa8] sm:$0xff] %v1383
      %1416 = vst [vmem:[%s302 + $0xb0] sm:$0xff] %v1384
      %1417 = vst [vmem:[%s302 + $0xb8] sm:$0xff] %v1385
      %1418 = vst [vmem:[%s302 + $0xc0] sm:$0xff] %v1386
      %1419 = vst [vmem:[%s302 + $0xc8] sm:$0xff] %v1387
      %1420 = vst [vmem:[%s302 + $0xd0] sm:$0xff] %v1388
      %1421 = vst [vmem:[%s302 + $0xd8] sm:$0xff] %v1389
      %1422 = vst [vmem:[%s302 + $0xe0] sm:$0xff] %v1390
      %1423 = vst [vmem:[%s302 + $0xe8] sm:$0xff] %v1391
      %1424 = vst [vmem:[%s302 + $0xf0] sm:$0xff] %v1392
      %1425 = vst [vmem:[%s302 + $0xf8] sm:$0xff] %v1393
      %s1426 = smul.u32 32, %s18
      %p1427 = scmp.lt.s32.totalorder %s1426, 63
      %s1428 = scalar_select %p1427, %s1426, 63
      %s1429 = smul.addr %s1428, 8
      %s1430 = scalar_lea.vmem %s7, %s1429
      // Predicated region
      $region49: #{fwd.1} parent=47 // pred_check
        %p1431 = pneg %p193
      $region50: #{fwd.1} parent=47 // pred_check_branch
        %1433 = sbr.rel (%p1431) target = $region52
      $region51: #{fwd.1} parent=47 // pred_region
        %s1434 = smul.u32 32, %s18
      $region52: #{fwd.1} parent=47 // pred_fallthru
        _
    $region48: #{fwd.1} parent=5 // pred_fallthru
      _
    %p1435 = scmp.le.s32.totalorder 2, %s13
    // Predicated region
    $region53: #{fwd.1} parent=5 // pred_check
      %p1436 = pneg %p1435
    $region54: #{fwd.1} parent=5 // pred_check_branch
      %1438 = sbr.rel (%p1436) target = $region56
    $region55: #{fwd.1} parent=5 // pred_region
      %s1439 = ssub.s32 %s13, 2
      // Predicated region
      $region57: #{fwd.1} parent=55 // pred_check
        %p1440 = pneg %p199
      $region58: #{fwd.1} parent=55 // pred_check_branch
        %1442 = sbr.rel (%p1440) target = $region60
      $region59: #{fwd.1} parent=55 // pred_region
        %s1443 = smul.u32 32, %s19
        %p1444 = scmp.lt.s32.totalorder %s1443, 63
        %s1445 = scalar_select %p1444, %s1443, 63
        %s1446 = smul.addr %s1445, 8
        %s1447 = scalar_lea.vmem %s7, %s1446
      $region60: #{fwd.1} parent=55 // pred_fallthru
        _
    $region56: #{fwd.1} parent=5 // pred_fallthru
      _
  $region6: #{fwd.1} parent=0 // loop_footer
    %s17 = sadd.s32 1, %s13
  $region7: #{fwd.1} parent=0 // loop_footer_branch
    %12 = sbr.rel target = $region3
  $region8: #{fwd.1} parent=0 // loop_exit
    _

</llo_original>
